<compile_context>
chip_gen: v5e
topology: v5e:2x2
jax: 0.10.0
libtpu: 0.0.40
codegen_flags: <defaults>
</compile_context>

<pallas_src>
import functools
import numpy as np
import jax
import jax.numpy as jnp
from jax.experimental import pallas as pl
from jax.experimental.pallas import tpu as pltpu


# ----------------------------- Pallas kernel --------------------------------
def _tcn_stack_kernel(x_ref, w_ref, b_ref, p_ref, o_ref, *,
                      K, NB, F, dilations, lens, cins, w_offs, p_offs):
    """Fused TCNStack for NB lane-stacked batch elements.

    x_ref : (1, Cin0, NB*L0)   f32   lanes = [elem0 | elem1 | ... | elemNB-1]
    w_ref : (F, W_total)       bf16  packed conv weights (all blocks)
    b_ref : (F, 3*num_blocks)  f32   packed biases  [b1|b2|b3] per block
    p_ref : (max_band, P_tot)  f32   packed banded adaptive-pool coefficients
    o_ref : (1, F, NB*L_out)   f32
    """

    def slab(src, l_src, off, l_out):
        # Per-batch window [off, off+l_out) of a (C, NB*l_src) lane-stacked slab.
        parts = [src[:, b * l_src + off: b * l_src + off + l_out]
                 for b in range(NB)]
        return parts[0] if NB == 1 else jnp.concatenate(parts, axis=1)

    def conv(src, cin, l_src, l_out, d, w_off, b_col):
        # Dilated conv = K accumulating (F, cin) @ (cin, NB*l_out) bf16 matmuls.
        acc = None
        for k in range(K):
            wk = w_ref[:, w_off + k * cin: w_off + (k + 1) * cin]      # bf16
            ak = slab(src, l_src, k * d, l_out).astype(jnp.bfloat16)
            term = jnp.dot(wk, ak, preferred_element_type=jnp.float32)
            acc = term if acc is None else acc + term
        return acc + b_ref[:, b_col: b_col + 1]                        # f32 bias

    cur = x_ref[0]                                         # (Cin0, NB*L0) f32
    for blk, d in enumerate(dilations):
        l_in, l1, l2 = lens[blk]
        cin = cins[blk]
        w1_off, w2_off, w3_off = w_offs[blk]

        # two dilated convs + ReLU (dropout == identity at inference)
        h = jnp.maximum(conv(cur, cin, l_in, l1, d, w1_off, 3 * blk + 0), 0.0)
        h = jnp.maximum(conv(h,   F,   l1,   l2, d, w2_off, 3 * blk + 1), 0.0)

        # residual: banded AdaptiveAvgPool1d (VPU shifts + blends), then the
        # 1x1 conv.  Pool rows sum to 1, so pooling commutes with conv + bias.
        delta = l_in - l2
        p_off = p_offs[blk]
        xp = None
        for t in range(delta + 1):
            coef = p_ref[t: t + 1, p_off: p_off + NB * l2]             # (1, NB*l2)
            term = coef * slab(cur, l_in, t, l2)
            xp = term if xp is None else xp + term                     # (cin, NB*l2)
        w3 = w_ref[:, w3_off: w3_off + cin]
        res = jnp.dot(w3, xp.astype(jnp.bfloat16),
                      preferred_element_type=jnp.float32)
        res = res + b_ref[:, 3 * blk + 2: 3 * blk + 3]

        cur = res + h                                       # (F, NB*l2) f32

    # Lane-contiguous store; only the final partial 128-lane tile is masked.
    o_ref[0] = cur


# ------------------------------- glue / driver ------------------------------
def _adaptive_pool_matrix(l_in, l_out):
    """P (l_out, l_in) such that P @ x == AdaptiveAvgPool1d(l_out)(x)."""
    p = np.zeros((l_out, l_in), np.float32)
    for j in range(l_out):
        start = (j * l_in) // l_out
        end = -((-(j + 1) * l_in) // l_out)                 # ceil((j+1)*l_in/l_out)
        p[j, start:end] = 1.0 / float(end - start)
    return p


def tcn_stack_forward(x, block_params, block_dilations, kernel_size, batch_tile=4):
    """Fused TCNStack forward.  x: (N, Cin, L) -> (N, F, L_out)  (PyTorch layout)."""
    n, cin0, l0 = x.shape
    K = kernel_size
    f = block_params[0][0].shape[0]

    nb = max(1, min(batch_tile, n))                         # elements per grid step
    g = -(-n // nb)                                         # grid steps
    n_pad = g * nb

    # per-block sequence lengths / channel counts
    lens, cins = [], []
    l_in = l0
    for (w1, *_), d in zip(block_params, block_dilations):
        cins.append(w1.shape[1])
        l1 = l_in - d * (K - 1)
        l2 = l1 - d * (K - 1)
        assert l2 > 0, "sequence too short for this dilation/kernel_size"
        lens.append((l_in, l1, l2))
        l_in = l2
    l_final = l_in

    # ---- pack constants host-side (weights bf16, biases/pool-bands f32) ----
    w_cols, b_cols, p_cols = [], [], []
    w_offs, p_offs = [], []
    wcol = pcol = 0
    max_band = max(li - l2b for (li, _l1, l2b) in lens) + 1
    for (w1, b1, w2, b2, w3, b3), (li, _l1, l2b), cin_b in zip(block_params, lens, cins):
        w1r = np.transpose(np.asarray(w1, np.float32), (0, 2, 1)).reshape(f, K * cin_b)
        w2r = np.transpose(np.asarray(w2, np.float32), (0, 2, 1)).reshape(f, K * f)
        w3r = np.asarray(w3, np.float32)[:, :, 0]
        w_offs.append((wcol, wcol + K * cin_b, wcol + K * cin_b + K * f))
        wcol += K * cin_b + K * f + cin_b
        w_cols += [w1r, w2r, w3r]
        b_cols += [np.asarray(b1, np.float32).reshape(f, 1),
                   np.asarray(b2, np.float32).reshape(f, 1),
                   np.asarray(b3, np.float32).reshape(f, 1)]
        # banded adaptive-pool coefficients: pooled[:, j] = sum_t band[t, j] * x[:, j+t]
        pmat = _adaptive_pool_matrix(li, l2b)               # (l2, l_in), banded
        band = np.zeros((max_band, l2b), np.float32)
        for t in range(li - l2b + 1):
            band[t, :] = pmat[np.arange(l2b), np.arange(l2b) + t]
        p_cols.append(np.tile(band, (1, nb)))               # lane-tiled for NB elements
        p_offs.append(pcol)
        pcol += nb * l2b

    wpack = jnp.asarray(np.concatenate(w_cols, axis=1), dtype=jnp.bfloat16)
    bpack = jnp.asarray(np.concatenate(b_cols, axis=1), dtype=jnp.float32)
    ppack = jnp.asarray(np.concatenate(p_cols, axis=1), dtype=jnp.float32)

    # ---- lane-stack NB batch elements: (N, C, L) -> (G, C, NB*L) ----
    if n_pad != n:
        x = jnp.concatenate([x, jnp.zeros((n_pad - n, cin0, l0), x.dtype)], axis=0)
    xg = x.reshape(g, nb, cin0, l0).transpose(0, 2, 1, 3).reshape(g, cin0, nb * l0)

    kernel = functools.partial(
        _tcn_stack_kernel, K=K, NB=nb, F=f, dilations=tuple(block_dilations),
        lens=tuple(lens), cins=tuple(cins),
        w_offs=tuple(w_offs), p_offs=tuple(p_offs))

    # explicit (conservative) VMEM budget; tiny at these shapes
    block_bytes = 4 * (cin0 * nb * l0 + f * nb * l_final)
    const_bytes = 2 * wpack.size + 4 * bpack.size + 4 * ppack.size
    vmem_limit = int(min(max(8 * block_bytes + 4 * const_bytes, 16 * 2 ** 20),
                         64 * 2 ** 20))

    out = pl.pallas_call(
        kernel,
        out_shape=jax.ShapeDtypeStruct((g, f, nb * l_final), jnp.float32),
        grid=(g,),
        in_specs=[
            pl.BlockSpec((1, cin0, nb * l0), lambda i: (i, 0, 0)),
            # constant index maps -> the packed weight slabs are fetched once
            pl.BlockSpec(wpack.shape, lambda i: (0, 0)),
            pl.BlockSpec(bpack.shape, lambda i: (0, 0)),
            pl.BlockSpec(ppack.shape, lambda i: (0, 0)),
        ],
        out_specs=pl.BlockSpec((1, f, nb * l_final), lambda i: (i, 0, 0)),
        compiler_params=pltpu.CompilerParams(
            dimension_semantics=("parallel",),   # v7x: both TCs take grid steps
            vmem_limit_bytes=vmem_limit),
    )(xg, wpack, bpack, ppack)

    # un-interleave the lane-stacked batch: (G, F, NB*Lf) -> (N, F, Lf)
    out = out.reshape(g, f, nb, l_final).transpose(0, 2, 1, 3).reshape(n_pad, f, l_final)
    return out[:n]


# ------------------------ deterministic parameter init ----------------------
def _make_weightnorm_conv(key, cin, cout, k, use_bias):
    """Mimic nn.utils.weight_norm(nn.Conv1d(cin, cout, k)): w = g * v/||v||."""
    kv, kg, kb = jax.random.split(key, 3)
    v = jax.random.normal(kv, (cout, cin, k), jnp.float32) * 0.1   # torch (O, I, K)
    g = jax.random.uniform(kg, (cout,), jnp.float32, minval=0.5, maxval=1.5)
    norm = jnp.sqrt(jnp.sum(v * v, axis=(1, 2), keepdims=True))
    w = g[:, None, None] * v / norm                                # (O, I, K)
    if use_bias:
        b = jax.random.normal(kb, (cout,), jnp.float32) * 0.1
    else:
        b = jnp.zeros((cout,), jnp.float32)
    return w, b


def init_block_params(key, cin, filter_num, kernel_size, use_bias):
    k1, k2, k3 = jax.random.split(key, 3)
    w1, b1 = _make_weightnorm_conv(k1, cin, filter_num, kernel_size, use_bias)
    w2, b2 = _make_weightnorm_conv(k2, filter_num, filter_num, kernel_size, use_bias)
    w3, b3 = _make_weightnorm_conv(k3, cin, filter_num, 1, use_bias)
    return (w1, b1, w2, b2, w3, b3)


# --------------------------- pure-JAX reference ------------------------------
def _conv1d_ref(x, w, b, dilation):
    f, _cin, kk = w.shape
    lout = x.shape[-1] - dilation * (kk - 1)
    out = jnp.zeros((x.shape[0], f, lout), jnp.float32)
    for t in range(kk):
        out = out + jnp.einsum('ncl,fc->nfl',
                               x[:, :, t * dilation: t * dilation + lout],
                               w[:, :, t], precision=jax.lax.Precision.HIGHEST)
    return out + b[None, :, None]


def tcn_stack_reference(x, block_params, block_dilations, kernel_size):
    for (w1, b1, w2, b2, w3, b3), d in zip(block_params, block_dilations):
        h = jax.nn.relu(_conv1d_ref(x, w1, b1, d))
        h = jax.nn.relu(_conv1d_ref(h, w2, b2, d))
        res = _conv1d_ref(x, w3, b3, d)
        pool = _adaptive_pool_matrix(res.shape[-1], h.shape[-1])   # (L2, L)
        res = jnp.einsum('ncl,ol->nco', res, jnp.asarray(pool),
                         precision=jax.lax.Precision.HIGHEST)
        x = res + h
    return x


# ----------------------------------- main ------------------------------------
if __name__ == "__main__":
    # TCNStack(layer_num=2, input_dim=4, filter_num=8, kernel_size=3,
    #          use_bias=True, dropout_rate=0.1)  -- dropout is identity at eval.
    layer_num, input_dim, filter_num, kernel_size = 2, 4, 8, 3
    use_bias = True
    batch, seq_len = 8, 64                 # 8 elems, 4 per grid step -> grid=(2,)

    # block channel-in / dilation schedule, exactly as TCNStack.__init__ builds it
    specs = [(input_dim, 1)]
    for i in range(1, layer_num - 1):
        specs.append((filter_num, 2 ** i))
    specs.append((filter_num, 2 ** (layer_num - 1)))

    root = jax.random.PRNGKey(0)
    kx, kp = jax.random.split(root)
    x = jax.random.normal(kx, (batch, input_dim, seq_len), jnp.float32)  # (N, C, L)

    keys = jax.random.split(kp, len(specs))
    raw_params = [init_block_params(keys[i], cin, filter_num, kernel_size, use_bias)
                  for i, (cin, _) in enumerate(specs)]
    dils = [d for (_, d) in specs]

    out = tcn_stack_forward(x, raw_params, dils, kernel_size, batch_tile=4)
    out = jax.block_until_ready(out)
    # each block shrinks L by 2*d*(K-1): 64 -> 60 -> 52
    assert out.shape == (batch, filter_num, 52), out.shape

    # numerical check vs f32/HIGHEST-precision reference; tolerance covers the
    # bf16 MXU operands used in the kernel (inference precision).
    ref = tcn_stack_reference(x, raw_params, dils, kernel_size)
    err = float(jnp.max(jnp.abs(out - ref)))
    assert err < 8e-2, f"numerical mismatch vs reference: max|diff|={err}"

    print("KERNEL_OK")
</pallas_src>

<mosaic_0001>
module attributes {stable_mosaic.version = 11 : i64} {
  func.func @_tcn_stack_kernel(%arg0: i32, %arg1: memref<1x4x256xf32, #tpu.memory_space<vmem>>, %arg2: memref<8x96xbf16, #tpu.memory_space<vmem>>, %arg3: memref<8x6xf32, #tpu.memory_space<vmem>>, %arg4: memref<9x448xf32, #tpu.memory_space<vmem>>, %arg5: memref<1x8x208xf32, #tpu.memory_space<vmem>>) attributes {dimension_semantics = [#tpu.dimension_semantics<parallel>], iteration_bounds = array<i64: 2>, scalar_prefetch = 0 : i64, scratch_operands = 0 : i64, tpu.core_type = #tpu.core_type<tc>, window_params = [{transform_indices = @transform_0, window_bounds = array<i64: 1, 4, 256>}, {pipeline_mode = #tpu.pipeline_mode<synchronous>, transform_indices = @transform_1, window_bounds = array<i64: 8, 96>}, {pipeline_mode = #tpu.pipeline_mode<synchronous>, transform_indices = @transform_2, window_bounds = array<i64: 8, 6>}, {pipeline_mode = #tpu.pipeline_mode<synchronous>, transform_indices = @transform_3, window_bounds = array<i64: 9, 448>}, {transform_indices = @transform_4, window_bounds = array<i64: 1, 8, 208>}]} {
    %c0 = arith.constant 0 : index
    %c0_0 = arith.constant 0 : index
    %c0_1 = arith.constant 0 : index
    %0 = vector.load %arg1[%c0, %c0_0, %c0_1] : memref<1x4x256xf32, #tpu.memory_space<vmem>>, vector<1x4x256xf32>
    %1 = vector.shape_cast %0 : vector<1x4x256xf32> to vector<4x256xf32>
    %c0_2 = arith.constant 0 : index
    %c0_3 = arith.constant 0 : index
    %2 = vector.load %arg2[%c0_2, %c0_3] : memref<8x96xbf16, #tpu.memory_space<vmem>>, vector<8x4xbf16>
    %3 = vector.extract_strided_slice %1 {offsets = [0, 0], sizes = [4, 62], strides = [1, 1]} : vector<4x256xf32> to vector<4x62xf32>
    %4 = vector.extract_strided_slice %1 {offsets = [0, 64], sizes = [4, 62], strides = [1, 1]} : vector<4x256xf32> to vector<4x62xf32>
    %5 = vector.extract_strided_slice %1 {offsets = [0, 128], sizes = [4, 62], strides = [1, 1]} : vector<4x256xf32> to vector<4x62xf32>
    %6 = vector.extract_strided_slice %1 {offsets = [0, 192], sizes = [4, 62], strides = [1, 1]} : vector<4x256xf32> to vector<4x62xf32>
    %7 = tpu.concatenate %3, %4, %5, %6 in 1 : vector<4x62xf32>, vector<4x62xf32>, vector<4x62xf32>, vector<4x62xf32> -> vector<4x248xf32>
    %8 = arith.truncf %7 : vector<4x248xf32> to vector<4x248xbf16>
    %cst = arith.constant dense<0.000000e+00> : vector<8x248xf32>
    %9 = tpu.matmul %2, %8, %cst {dimension_numbers = #tpu.dot_dimension_numbers<[1], [0], [0], [1], [0, 0, 1, 1], [], []>} : vector<8x4xbf16>, vector<4x248xbf16>, vector<8x248xf32> -> vector<8x248xf32>
    %c0_4 = arith.constant 0 : index
    %c4 = arith.constant 4 : index
    %10 = vector.load %arg2[%c0_4, %c4] : memref<8x96xbf16, #tpu.memory_space<vmem>>, vector<8x4xbf16>
    %11 = vector.extract_strided_slice %1 {offsets = [0, 1], sizes = [4, 62], strides = [1, 1]} : vector<4x256xf32> to vector<4x62xf32>
    %12 = vector.extract_strided_slice %1 {offsets = [0, 65], sizes = [4, 62], strides = [1, 1]} : vector<4x256xf32> to vector<4x62xf32>
    %13 = vector.extract_strided_slice %1 {offsets = [0, 129], sizes = [4, 62], strides = [1, 1]} : vector<4x256xf32> to vector<4x62xf32>
    %14 = vector.extract_strided_slice %1 {offsets = [0, 193], sizes = [4, 62], strides = [1, 1]} : vector<4x256xf32> to vector<4x62xf32>
    %15 = tpu.concatenate %11, %12, %13, %14 in 1 : vector<4x62xf32>, vector<4x62xf32>, vector<4x62xf32>, vector<4x62xf32> -> vector<4x248xf32>
    %16 = arith.truncf %15 : vector<4x248xf32> to vector<4x248xbf16>
    %cst_5 = arith.constant dense<0.000000e+00> : vector<8x248xf32>
    %17 = tpu.matmul %10, %16, %cst_5 {dimension_numbers = #tpu.dot_dimension_numbers<[1], [0], [0], [1], [0, 0, 1, 1], [], []>} : vector<8x4xbf16>, vector<4x248xbf16>, vector<8x248xf32> -> vector<8x248xf32>
    %18 = arith.addf %9, %17 : vector<8x248xf32>
    %c0_6 = arith.constant 0 : index
    %c8 = arith.constant 8 : index
    %19 = vector.load %arg2[%c0_6, %c8] : memref<8x96xbf16, #tpu.memory_space<vmem>>, vector<8x4xbf16>
    %20 = vector.extract_strided_slice %1 {offsets = [0, 2], sizes = [4, 62], strides = [1, 1]} : vector<4x256xf32> to vector<4x62xf32>
    %21 = vector.extract_strided_slice %1 {offsets = [0, 66], sizes = [4, 62], strides = [1, 1]} : vector<4x256xf32> to vector<4x62xf32>
    %22 = vector.extract_strided_slice %1 {offsets = [0, 130], sizes = [4, 62], strides = [1, 1]} : vector<4x256xf32> to vector<4x62xf32>
    %23 = vector.extract_strided_slice %1 {offsets = [0, 194], sizes = [4, 62], strides = [1, 1]} : vector<4x256xf32> to vector<4x62xf32>
    %24 = tpu.concatenate %20, %21, %22, %23 in 1 : vector<4x62xf32>, vector<4x62xf32>, vector<4x62xf32>, vector<4x62xf32> -> vector<4x248xf32>
    %25 = arith.truncf %24 : vector<4x248xf32> to vector<4x248xbf16>
    %cst_7 = arith.constant dense<0.000000e+00> : vector<8x248xf32>
    %26 = tpu.matmul %19, %25, %cst_7 {dimension_numbers = #tpu.dot_dimension_numbers<[1], [0], [0], [1], [0, 0, 1, 1], [], []>} : vector<8x4xbf16>, vector<4x248xbf16>, vector<8x248xf32> -> vector<8x248xf32>
    %27 = arith.addf %18, %26 : vector<8x248xf32>
    %c0_8 = arith.constant 0 : index
    %c0_9 = arith.constant 0 : index
    %28 = vector.load %arg3[%c0_8, %c0_9] : memref<8x6xf32, #tpu.memory_space<vmem>>, vector<8x1xf32>
    %29 = vector.broadcast %28 : vector<8x1xf32> to vector<8x248xf32>
    %30 = arith.addf %27, %29 : vector<8x248xf32>
    %cst_10 = arith.constant 0.000000e+00 : f32
    %31 = vector.broadcast %cst_10 : f32 to vector<8x248xf32>
    %32 = arith.maximumf %30, %31 : vector<8x248xf32>
    %c0_11 = arith.constant 0 : index
    %c12 = arith.constant 12 : index
    %33 = vector.load %arg2[%c0_11, %c12] : memref<8x96xbf16, #tpu.memory_space<vmem>>, vector<8x8xbf16>
    %34 = vector.extract_strided_slice %32 {offsets = [0, 0], sizes = [8, 60], strides = [1, 1]} : vector<8x248xf32> to vector<8x60xf32>
    %35 = vector.extract_strided_slice %32 {offsets = [0, 62], sizes = [8, 60], strides = [1, 1]} : vector<8x248xf32> to vector<8x60xf32>
    %36 = vector.extract_strided_slice %32 {offsets = [0, 124], sizes = [8, 60], strides = [1, 1]} : vector<8x248xf32> to vector<8x60xf32>
    %37 = vector.extract_strided_slice %32 {offsets = [0, 186], sizes = [8, 60], strides = [1, 1]} : vector<8x248xf32> to vector<8x60xf32>
    %38 = tpu.concatenate %34, %35, %36, %37 in 1 : vector<8x60xf32>, vector<8x60xf32>, vector<8x60xf32>, vector<8x60xf32> -> vector<8x240xf32>
    %39 = arith.truncf %38 : vector<8x240xf32> to vector<8x240xbf16>
    %cst_12 = arith.constant dense<0.000000e+00> : vector<8x240xf32>
    %40 = tpu.matmul %33, %39, %cst_12 {dimension_numbers = #tpu.dot_dimension_numbers<[1], [0], [0], [1], [0, 0, 1, 1], [], []>} : vector<8x8xbf16>, vector<8x240xbf16>, vector<8x240xf32> -> vector<8x240xf32>
    %c0_13 = arith.constant 0 : index
    %c20 = arith.constant 20 : index
    %41 = vector.load %arg2[%c0_13, %c20] : memref<8x96xbf16, #tpu.memory_space<vmem>>, vector<8x8xbf16>
    %42 = vector.extract_strided_slice %32 {offsets = [0, 1], sizes = [8, 60], strides = [1, 1]} : vector<8x248xf32> to vector<8x60xf32>
    %43 = vector.extract_strided_slice %32 {offsets = [0, 63], sizes = [8, 60], strides = [1, 1]} : vector<8x248xf32> to vector<8x60xf32>
    %44 = vector.extract_strided_slice %32 {offsets = [0, 125], sizes = [8, 60], strides = [1, 1]} : vector<8x248xf32> to vector<8x60xf32>
    %45 = vector.extract_strided_slice %32 {offsets = [0, 187], sizes = [8, 60], strides = [1, 1]} : vector<8x248xf32> to vector<8x60xf32>
    %46 = tpu.concatenate %42, %43, %44, %45 in 1 : vector<8x60xf32>, vector<8x60xf32>, vector<8x60xf32>, vector<8x60xf32> -> vector<8x240xf32>
    %47 = arith.truncf %46 : vector<8x240xf32> to vector<8x240xbf16>
    %cst_14 = arith.constant dense<0.000000e+00> : vector<8x240xf32>
    %48 = tpu.matmul %41, %47, %cst_14 {dimension_numbers = #tpu.dot_dimension_numbers<[1], [0], [0], [1], [0, 0, 1, 1], [], []>} : vector<8x8xbf16>, vector<8x240xbf16>, vector<8x240xf32> -> vector<8x240xf32>
    %49 = arith.addf %40, %48 : vector<8x240xf32>
    %c0_15 = arith.constant 0 : index
    %c28 = arith.constant 28 : index
    %50 = vector.load %arg2[%c0_15, %c28] : memref<8x96xbf16, #tpu.memory_space<vmem>>, vector<8x8xbf16>
    %51 = vector.extract_strided_slice %32 {offsets = [0, 2], sizes = [8, 60], strides = [1, 1]} : vector<8x248xf32> to vector<8x60xf32>
    %52 = vector.extract_strided_slice %32 {offsets = [0, 64], sizes = [8, 60], strides = [1, 1]} : vector<8x248xf32> to vector<8x60xf32>
    %53 = vector.extract_strided_slice %32 {offsets = [0, 126], sizes = [8, 60], strides = [1, 1]} : vector<8x248xf32> to vector<8x60xf32>
    %54 = vector.extract_strided_slice %32 {offsets = [0, 188], sizes = [8, 60], strides = [1, 1]} : vector<8x248xf32> to vector<8x60xf32>
    %55 = tpu.concatenate %51, %52, %53, %54 in 1 : vector<8x60xf32>, vector<8x60xf32>, vector<8x60xf32>, vector<8x60xf32> -> vector<8x240xf32>
    %56 = arith.truncf %55 : vector<8x240xf32> to vector<8x240xbf16>
    %cst_16 = arith.constant dense<0.000000e+00> : vector<8x240xf32>
    %57 = tpu.matmul %50, %56, %cst_16 {dimension_numbers = #tpu.dot_dimension_numbers<[1], [0], [0], [1], [0, 0, 1, 1], [], []>} : vector<8x8xbf16>, vector<8x240xbf16>, vector<8x240xf32> -> vector<8x240xf32>
    %58 = arith.addf %49, %57 : vector<8x240xf32>
    %c0_17 = arith.constant 0 : index
    %c1 = arith.constant 1 : index
    %59 = vector.load %arg3[%c0_17, %c1] : memref<8x6xf32, #tpu.memory_space<vmem>>, vector<8x1xf32>
    %60 = vector.broadcast %59 : vector<8x1xf32> to vector<8x240xf32>
    %61 = arith.addf %58, %60 : vector<8x240xf32>
    %cst_18 = arith.constant 0.000000e+00 : f32
    %62 = vector.broadcast %cst_18 : f32 to vector<8x240xf32>
    %63 = arith.maximumf %61, %62 : vector<8x240xf32>
    %c0_19 = arith.constant 0 : index
    %c0_20 = arith.constant 0 : index
    %64 = vector.load %arg4[%c0_19, %c0_20] : memref<9x448xf32, #tpu.memory_space<vmem>>, vector<1x240xf32>
    %65 = vector.extract_strided_slice %1 {offsets = [0, 0], sizes = [4, 60], strides = [1, 1]} : vector<4x256xf32> to vector<4x60xf32>
    %66 = vector.extract_strided_slice %1 {offsets = [0, 64], sizes = [4, 60], strides = [1, 1]} : vector<4x256xf32> to vector<4x60xf32>
    %67 = vector.extract_strided_slice %1 {offsets = [0, 128], sizes = [4, 60], strides = [1, 1]} : vector<4x256xf32> to vector<4x60xf32>
    %68 = vector.extract_strided_slice %1 {offsets = [0, 192], sizes = [4, 60], strides = [1, 1]} : vector<4x256xf32> to vector<4x60xf32>
    %69 = tpu.concatenate %65, %66, %67, %68 in 1 : vector<4x60xf32>, vector<4x60xf32>, vector<4x60xf32>, vector<4x60xf32> -> vector<4x240xf32>
    %70 = vector.broadcast %64 : vector<1x240xf32> to vector<4x240xf32>
    %71 = arith.mulf %70, %69 : vector<4x240xf32>
    %c1_21 = arith.constant 1 : index
    %c0_22 = arith.constant 0 : index
    %72 = vector.load %arg4[%c1_21, %c0_22] : memref<9x448xf32, #tpu.memory_space<vmem>>, vector<1x240xf32>
    %73 = vector.extract_strided_slice %1 {offsets = [0, 1], sizes = [4, 60], strides = [1, 1]} : vector<4x256xf32> to vector<4x60xf32>
    %74 = vector.extract_strided_slice %1 {offsets = [0, 65], sizes = [4, 60], strides = [1, 1]} : vector<4x256xf32> to vector<4x60xf32>
    %75 = vector.extract_strided_slice %1 {offsets = [0, 129], sizes = [4, 60], strides = [1, 1]} : vector<4x256xf32> to vector<4x60xf32>
    %76 = vector.extract_strided_slice %1 {offsets = [0, 193], sizes = [4, 60], strides = [1, 1]} : vector<4x256xf32> to vector<4x60xf32>
    %77 = tpu.concatenate %73, %74, %75, %76 in 1 : vector<4x60xf32>, vector<4x60xf32>, vector<4x60xf32>, vector<4x60xf32> -> vector<4x240xf32>
    %78 = vector.broadcast %72 : vector<1x240xf32> to vector<4x240xf32>
    %79 = arith.mulf %78, %77 : vector<4x240xf32>
    %80 = arith.addf %71, %79 : vector<4x240xf32>
    %c2 = arith.constant 2 : index
    %c0_23 = arith.constant 0 : index
    %81 = vector.load %arg4[%c2, %c0_23] : memref<9x448xf32, #tpu.memory_space<vmem>>, vector<1x240xf32>
    %82 = vector.extract_strided_slice %1 {offsets = [0, 2], sizes = [4, 60], strides = [1, 1]} : vector<4x256xf32> to vector<4x60xf32>
    %83 = vector.extract_strided_slice %1 {offsets = [0, 66], sizes = [4, 60], strides = [1, 1]} : vector<4x256xf32> to vector<4x60xf32>
    %84 = vector.extract_strided_slice %1 {offsets = [0, 130], sizes = [4, 60], strides = [1, 1]} : vector<4x256xf32> to vector<4x60xf32>
    %85 = vector.extract_strided_slice %1 {offsets = [0, 194], sizes = [4, 60], strides = [1, 1]} : vector<4x256xf32> to vector<4x60xf32>
    %86 = tpu.concatenate %82, %83, %84, %85 in 1 : vector<4x60xf32>, vector<4x60xf32>, vector<4x60xf32>, vector<4x60xf32> -> vector<4x240xf32>
    %87 = vector.broadcast %81 : vector<1x240xf32> to vector<4x240xf32>
    %88 = arith.mulf %87, %86 : vector<4x240xf32>
    %89 = arith.addf %80, %88 : vector<4x240xf32>
    %c3 = arith.constant 3 : index
    %c0_24 = arith.constant 0 : index
    %90 = vector.load %arg4[%c3, %c0_24] : memref<9x448xf32, #tpu.memory_space<vmem>>, vector<1x240xf32>
    %91 = vector.extract_strided_slice %1 {offsets = [0, 3], sizes = [4, 60], strides = [1, 1]} : vector<4x256xf32> to vector<4x60xf32>
    %92 = vector.extract_strided_slice %1 {offsets = [0, 67], sizes = [4, 60], strides = [1, 1]} : vector<4x256xf32> to vector<4x60xf32>
    %93 = vector.extract_strided_slice %1 {offsets = [0, 131], sizes = [4, 60], strides = [1, 1]} : vector<4x256xf32> to vector<4x60xf32>
    %94 = vector.extract_strided_slice %1 {offsets = [0, 195], sizes = [4, 60], strides = [1, 1]} : vector<4x256xf32> to vector<4x60xf32>
    %95 = tpu.concatenate %91, %92, %93, %94 in 1 : vector<4x60xf32>, vector<4x60xf32>, vector<4x60xf32>, vector<4x60xf32> -> vector<4x240xf32>
    %96 = vector.broadcast %90 : vector<1x240xf32> to vector<4x240xf32>
    %97 = arith.mulf %96, %95 : vector<4x240xf32>
    %98 = arith.addf %89, %97 : vector<4x240xf32>
    %c4_25 = arith.constant 4 : index
    %c0_26 = arith.constant 0 : index
    %99 = vector.load %arg4[%c4_25, %c0_26] : memref<9x448xf32, #tpu.memory_space<vmem>>, vector<1x240xf32>
    %100 = vector.extract_strided_slice %1 {offsets = [0, 4], sizes = [4, 60], strides = [1, 1]} : vector<4x256xf32> to vector<4x60xf32>
    %101 = vector.extract_strided_slice %1 {offsets = [0, 68], sizes = [4, 60], strides = [1, 1]} : vector<4x256xf32> to vector<4x60xf32>
    %102 = vector.extract_strided_slice %1 {offsets = [0, 132], sizes = [4, 60], strides = [1, 1]} : vector<4x256xf32> to vector<4x60xf32>
    %103 = vector.extract_strided_slice %1 {offsets = [0, 196], sizes = [4, 60], strides = [1, 1]} : vector<4x256xf32> to vector<4x60xf32>
    %104 = tpu.concatenate %100, %101, %102, %103 in 1 : vector<4x60xf32>, vector<4x60xf32>, vector<4x60xf32>, vector<4x60xf32> -> vector<4x240xf32>
    %105 = vector.broadcast %99 : vector<1x240xf32> to vector<4x240xf32>
    %106 = arith.mulf %105, %104 : vector<4x240xf32>
    %107 = arith.addf %98, %106 : vector<4x240xf32>
    %c0_27 = arith.constant 0 : index
    %c36 = arith.constant 36 : index
    %108 = vector.load %arg2[%c0_27, %c36] : memref<8x96xbf16, #tpu.memory_space<vmem>>, vector<8x4xbf16>
    %109 = arith.truncf %107 : vector<4x240xf32> to vector<4x240xbf16>
    %cst_28 = arith.constant dense<0.000000e+00> : vector<8x240xf32>
    %110 = tpu.matmul %108, %109, %cst_28 {dimension_numbers = #tpu.dot_dimension_numbers<[1], [0], [0], [1], [0, 0, 1, 1], [], []>} : vector<8x4xbf16>, vector<4x240xbf16>, vector<8x240xf32> -> vector<8x240xf32>
    %c0_29 = arith.constant 0 : index
    %c2_30 = arith.constant 2 : index
    %111 = vector.load %arg3[%c0_29, %c2_30] : memref<8x6xf32, #tpu.memory_space<vmem>>, vector<8x1xf32>
    %112 = vector.broadcast %111 : vector<8x1xf32> to vector<8x240xf32>
    %113 = arith.addf %110, %112 : vector<8x240xf32>
    %114 = arith.addf %113, %63 : vector<8x240xf32>
    %c0_31 = arith.constant 0 : index
    %c40 = arith.constant 40 : index
    %115 = vector.load %arg2[%c0_31, %c40] : memref<8x96xbf16, #tpu.memory_space<vmem>>, vector<8x8xbf16>
    %116 = vector.extract_strided_slice %114 {offsets = [0, 0], sizes = [8, 56], strides = [1, 1]} : vector<8x240xf32> to vector<8x56xf32>
    %117 = vector.extract_strided_slice %114 {offsets = [0, 60], sizes = [8, 56], strides = [1, 1]} : vector<8x240xf32> to vector<8x56xf32>
    %118 = vector.extract_strided_slice %114 {offsets = [0, 120], sizes = [8, 56], strides = [1, 1]} : vector<8x240xf32> to vector<8x56xf32>
    %119 = vector.extract_strided_slice %114 {offsets = [0, 180], sizes = [8, 56], strides = [1, 1]} : vector<8x240xf32> to vector<8x56xf32>
    %120 = tpu.concatenate %116, %117, %118, %119 in 1 : vector<8x56xf32>, vector<8x56xf32>, vector<8x56xf32>, vector<8x56xf32> -> vector<8x224xf32>
    %121 = arith.truncf %120 : vector<8x224xf32> to vector<8x224xbf16>
    %cst_32 = arith.constant dense<0.000000e+00> : vector<8x224xf32>
    %122 = tpu.matmul %115, %121, %cst_32 {dimension_numbers = #tpu.dot_dimension_numbers<[1], [0], [0], [1], [0, 0, 1, 1], [], []>} : vector<8x8xbf16>, vector<8x224xbf16>, vector<8x224xf32> -> vector<8x224xf32>
    %c0_33 = arith.constant 0 : index
    %c48 = arith.constant 48 : index
    %123 = vector.load %arg2[%c0_33, %c48] : memref<8x96xbf16, #tpu.memory_space<vmem>>, vector<8x8xbf16>
    %124 = vector.extract_strided_slice %114 {offsets = [0, 2], sizes = [8, 56], strides = [1, 1]} : vector<8x240xf32> to vector<8x56xf32>
    %125 = vector.extract_strided_slice %114 {offsets = [0, 62], sizes = [8, 56], strides = [1, 1]} : vector<8x240xf32> to vector<8x56xf32>
    %126 = vector.extract_strided_slice %114 {offsets = [0, 122], sizes = [8, 56], strides = [1, 1]} : vector<8x240xf32> to vector<8x56xf32>
    %127 = vector.extract_strided_slice %114 {offsets = [0, 182], sizes = [8, 56], strides = [1, 1]} : vector<8x240xf32> to vector<8x56xf32>
    %128 = tpu.concatenate %124, %125, %126, %127 in 1 : vector<8x56xf32>, vector<8x56xf32>, vector<8x56xf32>, vector<8x56xf32> -> vector<8x224xf32>
    %129 = arith.truncf %128 : vector<8x224xf32> to vector<8x224xbf16>
    %cst_34 = arith.constant dense<0.000000e+00> : vector<8x224xf32>
    %130 = tpu.matmul %123, %129, %cst_34 {dimension_numbers = #tpu.dot_dimension_numbers<[1], [0], [0], [1], [0, 0, 1, 1], [], []>} : vector<8x8xbf16>, vector<8x224xbf16>, vector<8x224xf32> -> vector<8x224xf32>
    %131 = arith.addf %122, %130 : vector<8x224xf32>
    %c0_35 = arith.constant 0 : index
    %c56 = arith.constant 56 : index
    %132 = vector.load %arg2[%c0_35, %c56] : memref<8x96xbf16, #tpu.memory_space<vmem>>, vector<8x8xbf16>
    %133 = vector.extract_strided_slice %114 {offsets = [0, 4], sizes = [8, 56], strides = [1, 1]} : vector<8x240xf32> to vector<8x56xf32>
    %134 = vector.extract_strided_slice %114 {offsets = [0, 64], sizes = [8, 56], strides = [1, 1]} : vector<8x240xf32> to vector<8x56xf32>
    %135 = vector.extract_strided_slice %114 {offsets = [0, 124], sizes = [8, 56], strides = [1, 1]} : vector<8x240xf32> to vector<8x56xf32>
    %136 = vector.extract_strided_slice %114 {offsets = [0, 184], sizes = [8, 56], strides = [1, 1]} : vector<8x240xf32> to vector<8x56xf32>
    %137 = tpu.concatenate %133, %134, %135, %136 in 1 : vector<8x56xf32>, vector<8x56xf32>, vector<8x56xf32>, vector<8x56xf32> -> vector<8x224xf32>
    %138 = arith.truncf %137 : vector<8x224xf32> to vector<8x224xbf16>
    %cst_36 = arith.constant dense<0.000000e+00> : vector<8x224xf32>
    %139 = tpu.matmul %132, %138, %cst_36 {dimension_numbers = #tpu.dot_dimension_numbers<[1], [0], [0], [1], [0, 0, 1, 1], [], []>} : vector<8x8xbf16>, vector<8x224xbf16>, vector<8x224xf32> -> vector<8x224xf32>
    %140 = arith.addf %131, %139 : vector<8x224xf32>
    %c0_37 = arith.constant 0 : index
    %c3_38 = arith.constant 3 : index
    %141 = vector.load %arg3[%c0_37, %c3_38] : memref<8x6xf32, #tpu.memory_space<vmem>>, vector<8x1xf32>
    %142 = vector.broadcast %141 : vector<8x1xf32> to vector<8x224xf32>
    %143 = arith.addf %140, %142 : vector<8x224xf32>
    %cst_39 = arith.constant 0.000000e+00 : f32
    %144 = vector.broadcast %cst_39 : f32 to vector<8x224xf32>
    %145 = arith.maximumf %143, %144 : vector<8x224xf32>
    %c0_40 = arith.constant 0 : index
    %c64 = arith.constant 64 : index
    %146 = vector.load %arg2[%c0_40, %c64] : memref<8x96xbf16, #tpu.memory_space<vmem>>, vector<8x8xbf16>
    %147 = vector.extract_strided_slice %145 {offsets = [0, 0], sizes = [8, 52], strides = [1, 1]} : vector<8x224xf32> to vector<8x52xf32>
    %148 = vector.extract_strided_slice %145 {offsets = [0, 56], sizes = [8, 52], strides = [1, 1]} : vector<8x224xf32> to vector<8x52xf32>
    %149 = vector.extract_strided_slice %145 {offsets = [0, 112], sizes = [8, 52], strides = [1, 1]} : vector<8x224xf32> to vector<8x52xf32>
    %150 = vector.extract_strided_slice %145 {offsets = [0, 168], sizes = [8, 52], strides = [1, 1]} : vector<8x224xf32> to vector<8x52xf32>
    %151 = tpu.concatenate %147, %148, %149, %150 in 1 : vector<8x52xf32>, vector<8x52xf32>, vector<8x52xf32>, vector<8x52xf32> -> vector<8x208xf32>
    %152 = arith.truncf %151 : vector<8x208xf32> to vector<8x208xbf16>
    %cst_41 = arith.constant dense<0.000000e+00> : vector<8x208xf32>
    %153 = tpu.matmul %146, %152, %cst_41 {dimension_numbers = #tpu.dot_dimension_numbers<[1], [0], [0], [1], [0, 0, 1, 1], [], []>} : vector<8x8xbf16>, vector<8x208xbf16>, vector<8x208xf32> -> vector<8x208xf32>
    %c0_42 = arith.constant 0 : index
    %c72 = arith.constant 72 : index
    %154 = vector.load %arg2[%c0_42, %c72] : memref<8x96xbf16, #tpu.memory_space<vmem>>, vector<8x8xbf16>
    %155 = vector.extract_strided_slice %145 {offsets = [0, 2], sizes = [8, 52], strides = [1, 1]} : vector<8x224xf32> to vector<8x52xf32>
    %156 = vector.extract_strided_slice %145 {offsets = [0, 58], sizes = [8, 52], strides = [1, 1]} : vector<8x224xf32> to vector<8x52xf32>
    %157 = vector.extract_strided_slice %145 {offsets = [0, 114], sizes = [8, 52], strides = [1, 1]} : vector<8x224xf32> to vector<8x52xf32>
    %158 = vector.extract_strided_slice %145 {offsets = [0, 170], sizes = [8, 52], strides = [1, 1]} : vector<8x224xf32> to vector<8x52xf32>
    %159 = tpu.concatenate %155, %156, %157, %158 in 1 : vector<8x52xf32>, vector<8x52xf32>, vector<8x52xf32>, vector<8x52xf32> -> vector<8x208xf32>
    %160 = arith.truncf %159 : vector<8x208xf32> to vector<8x208xbf16>
    %cst_43 = arith.constant dense<0.000000e+00> : vector<8x208xf32>
    %161 = tpu.matmul %154, %160, %cst_43 {dimension_numbers = #tpu.dot_dimension_numbers<[1], [0], [0], [1], [0, 0, 1, 1], [], []>} : vector<8x8xbf16>, vector<8x208xbf16>, vector<8x208xf32> -> vector<8x208xf32>
    %162 = arith.addf %153, %161 : vector<8x208xf32>
    %c0_44 = arith.constant 0 : index
    %c80 = arith.constant 80 : index
    %163 = vector.load %arg2[%c0_44, %c80] : memref<8x96xbf16, #tpu.memory_space<vmem>>, vector<8x8xbf16>
    %164 = vector.extract_strided_slice %145 {offsets = [0, 4], sizes = [8, 52], strides = [1, 1]} : vector<8x224xf32> to vector<8x52xf32>
    %165 = vector.extract_strided_slice %145 {offsets = [0, 60], sizes = [8, 52], strides = [1, 1]} : vector<8x224xf32> to vector<8x52xf32>
    %166 = vector.extract_strided_slice %145 {offsets = [0, 116], sizes = [8, 52], strides = [1, 1]} : vector<8x224xf32> to vector<8x52xf32>
    %167 = vector.extract_strided_slice %145 {offsets = [0, 172], sizes = [8, 52], strides = [1, 1]} : vector<8x224xf32> to vector<8x52xf32>
    %168 = tpu.concatenate %164, %165, %166, %167 in 1 : vector<8x52xf32>, vector<8x52xf32>, vector<8x52xf32>, vector<8x52xf32> -> vector<8x208xf32>
    %169 = arith.truncf %168 : vector<8x208xf32> to vector<8x208xbf16>
    %cst_45 = arith.constant dense<0.000000e+00> : vector<8x208xf32>
    %170 = tpu.matmul %163, %169, %cst_45 {dimension_numbers = #tpu.dot_dimension_numbers<[1], [0], [0], [1], [0, 0, 1, 1], [], []>} : vector<8x8xbf16>, vector<8x208xbf16>, vector<8x208xf32> -> vector<8x208xf32>
    %171 = arith.addf %162, %170 : vector<8x208xf32>
    %c0_46 = arith.constant 0 : index
    %c4_47 = arith.constant 4 : index
    %172 = vector.load %arg3[%c0_46, %c4_47] : memref<8x6xf32, #tpu.memory_space<vmem>>, vector<8x1xf32>
    %173 = vector.broadcast %172 : vector<8x1xf32> to vector<8x208xf32>
    %174 = arith.addf %171, %173 : vector<8x208xf32>
    %cst_48 = arith.constant 0.000000e+00 : f32
    %175 = vector.broadcast %cst_48 : f32 to vector<8x208xf32>
    %176 = arith.maximumf %174, %175 : vector<8x208xf32>
    %c0_49 = arith.constant 0 : index
    %c240 = arith.constant 240 : index
    %177 = vector.load %arg4[%c0_49, %c240] : memref<9x448xf32, #tpu.memory_space<vmem>>, vector<1x208xf32>
    %178 = vector.extract_strided_slice %114 {offsets = [0, 0], sizes = [8, 52], strides = [1, 1]} : vector<8x240xf32> to vector<8x52xf32>
    %179 = vector.extract_strided_slice %114 {offsets = [0, 60], sizes = [8, 52], strides = [1, 1]} : vector<8x240xf32> to vector<8x52xf32>
    %180 = vector.extract_strided_slice %114 {offsets = [0, 120], sizes = [8, 52], strides = [1, 1]} : vector<8x240xf32> to vector<8x52xf32>
    %181 = vector.extract_strided_slice %114 {offsets = [0, 180], sizes = [8, 52], strides = [1, 1]} : vector<8x240xf32> to vector<8x52xf32>
    %182 = tpu.concatenate %178, %179, %180, %181 in 1 : vector<8x52xf32>, vector<8x52xf32>, vector<8x52xf32>, vector<8x52xf32> -> vector<8x208xf32>
    %183 = vector.broadcast %177 : vector<1x208xf32> to vector<8x208xf32>
    %184 = arith.mulf %183, %182 : vector<8x208xf32>
    %c1_50 = arith.constant 1 : index
    %c240_51 = arith.constant 240 : index
    %185 = vector.load %arg4[%c1_50, %c240_51] : memref<9x448xf32, #tpu.memory_space<vmem>>, vector<1x208xf32>
    %186 = vector.extract_strided_slice %114 {offsets = [0, 1], sizes = [8, 52], strides = [1, 1]} : vector<8x240xf32> to vector<8x52xf32>
    %187 = vector.extract_strided_slice %114 {offsets = [0, 61], sizes = [8, 52], strides = [1, 1]} : vector<8x240xf32> to vector<8x52xf32>
    %188 = vector.extract_strided_slice %114 {offsets = [0, 121], sizes = [8, 52], strides = [1, 1]} : vector<8x240xf32> to vector<8x52xf32>
    %189 = vector.extract_strided_slice %114 {offsets = [0, 181], sizes = [8, 52], strides = [1, 1]} : vector<8x240xf32> to vector<8x52xf32>
    %190 = tpu.concatenate %186, %187, %188, %189 in 1 : vector<8x52xf32>, vector<8x52xf32>, vector<8x52xf32>, vector<8x52xf32> -> vector<8x208xf32>
    %191 = vector.broadcast %185 : vector<1x208xf32> to vector<8x208xf32>
    %192 = arith.mulf %191, %190 : vector<8x208xf32>
    %193 = arith.addf %184, %192 : vector<8x208xf32>
    %c2_52 = arith.constant 2 : index
    %c240_53 = arith.constant 240 : index
    %194 = vector.load %arg4[%c2_52, %c240_53] : memref<9x448xf32, #tpu.memory_space<vmem>>, vector<1x208xf32>
    %195 = vector.extract_strided_slice %114 {offsets = [0, 2], sizes = [8, 52], strides = [1, 1]} : vector<8x240xf32> to vector<8x52xf32>
    %196 = vector.extract_strided_slice %114 {offsets = [0, 62], sizes = [8, 52], strides = [1, 1]} : vector<8x240xf32> to vector<8x52xf32>
    %197 = vector.extract_strided_slice %114 {offsets = [0, 122], sizes = [8, 52], strides = [1, 1]} : vector<8x240xf32> to vector<8x52xf32>
    %198 = vector.extract_strided_slice %114 {offsets = [0, 182], sizes = [8, 52], strides = [1, 1]} : vector<8x240xf32> to vector<8x52xf32>
    %199 = tpu.concatenate %195, %196, %197, %198 in 1 : vector<8x52xf32>, vector<8x52xf32>, vector<8x52xf32>, vector<8x52xf32> -> vector<8x208xf32>
    %200 = vector.broadcast %194 : vector<1x208xf32> to vector<8x208xf32>
    %201 = arith.mulf %200, %199 : vector<8x208xf32>
    %202 = arith.addf %193, %201 : vector<8x208xf32>
    %c3_54 = arith.constant 3 : index
    %c240_55 = arith.constant 240 : index
    %203 = vector.load %arg4[%c3_54, %c240_55] : memref<9x448xf32, #tpu.memory_space<vmem>>, vector<1x208xf32>
    %204 = vector.extract_strided_slice %114 {offsets = [0, 3], sizes = [8, 52], strides = [1, 1]} : vector<8x240xf32> to vector<8x52xf32>
    %205 = vector.extract_strided_slice %114 {offsets = [0, 63], sizes = [8, 52], strides = [1, 1]} : vector<8x240xf32> to vector<8x52xf32>
    %206 = vector.extract_strided_slice %114 {offsets = [0, 123], sizes = [8, 52], strides = [1, 1]} : vector<8x240xf32> to vector<8x52xf32>
    %207 = vector.extract_strided_slice %114 {offsets = [0, 183], sizes = [8, 52], strides = [1, 1]} : vector<8x240xf32> to vector<8x52xf32>
    %208 = tpu.concatenate %204, %205, %206, %207 in 1 : vector<8x52xf32>, vector<8x52xf32>, vector<8x52xf32>, vector<8x52xf32> -> vector<8x208xf32>
    %209 = vector.broadcast %203 : vector<1x208xf32> to vector<8x208xf32>
    %210 = arith.mulf %209, %208 : vector<8x208xf32>
    %211 = arith.addf %202, %210 : vector<8x208xf32>
    %c4_56 = arith.constant 4 : index
    %c240_57 = arith.constant 240 : index
    %212 = vector.load %arg4[%c4_56, %c240_57] : memref<9x448xf32, #tpu.memory_space<vmem>>, vector<1x208xf32>
    %213 = vector.extract_strided_slice %114 {offsets = [0, 4], sizes = [8, 52], strides = [1, 1]} : vector<8x240xf32> to vector<8x52xf32>
    %214 = vector.extract_strided_slice %114 {offsets = [0, 64], sizes = [8, 52], strides = [1, 1]} : vector<8x240xf32> to vector<8x52xf32>
    %215 = vector.extract_strided_slice %114 {offsets = [0, 124], sizes = [8, 52], strides = [1, 1]} : vector<8x240xf32> to vector<8x52xf32>
    %216 = vector.extract_strided_slice %114 {offsets = [0, 184], sizes = [8, 52], strides = [1, 1]} : vector<8x240xf32> to vector<8x52xf32>
    %217 = tpu.concatenate %213, %214, %215, %216 in 1 : vector<8x52xf32>, vector<8x52xf32>, vector<8x52xf32>, vector<8x52xf32> -> vector<8x208xf32>
    %218 = vector.broadcast %212 : vector<1x208xf32> to vector<8x208xf32>
    %219 = arith.mulf %218, %217 : vector<8x208xf32>
    %220 = arith.addf %211, %219 : vector<8x208xf32>
    %c5 = arith.constant 5 : index
    %c240_58 = arith.constant 240 : index
    %221 = vector.load %arg4[%c5, %c240_58] : memref<9x448xf32, #tpu.memory_space<vmem>>, vector<1x208xf32>
    %222 = vector.extract_strided_slice %114 {offsets = [0, 5], sizes = [8, 52], strides = [1, 1]} : vector<8x240xf32> to vector<8x52xf32>
    %223 = vector.extract_strided_slice %114 {offsets = [0, 65], sizes = [8, 52], strides = [1, 1]} : vector<8x240xf32> to vector<8x52xf32>
    %224 = vector.extract_strided_slice %114 {offsets = [0, 125], sizes = [8, 52], strides = [1, 1]} : vector<8x240xf32> to vector<8x52xf32>
    %225 = vector.extract_strided_slice %114 {offsets = [0, 185], sizes = [8, 52], strides = [1, 1]} : vector<8x240xf32> to vector<8x52xf32>
    %226 = tpu.concatenate %222, %223, %224, %225 in 1 : vector<8x52xf32>, vector<8x52xf32>, vector<8x52xf32>, vector<8x52xf32> -> vector<8x208xf32>
    %227 = vector.broadcast %221 : vector<1x208xf32> to vector<8x208xf32>
    %228 = arith.mulf %227, %226 : vector<8x208xf32>
    %229 = arith.addf %220, %228 : vector<8x208xf32>
    %c6 = arith.constant 6 : index
    %c240_59 = arith.constant 240 : index
    %230 = vector.load %arg4[%c6, %c240_59] : memref<9x448xf32, #tpu.memory_space<vmem>>, vector<1x208xf32>
    %231 = vector.extract_strided_slice %114 {offsets = [0, 6], sizes = [8, 52], strides = [1, 1]} : vector<8x240xf32> to vector<8x52xf32>
    %232 = vector.extract_strided_slice %114 {offsets = [0, 66], sizes = [8, 52], strides = [1, 1]} : vector<8x240xf32> to vector<8x52xf32>
    %233 = vector.extract_strided_slice %114 {offsets = [0, 126], sizes = [8, 52], strides = [1, 1]} : vector<8x240xf32> to vector<8x52xf32>
    %234 = vector.extract_strided_slice %114 {offsets = [0, 186], sizes = [8, 52], strides = [1, 1]} : vector<8x240xf32> to vector<8x52xf32>
    %235 = tpu.concatenate %231, %232, %233, %234 in 1 : vector<8x52xf32>, vector<8x52xf32>, vector<8x52xf32>, vector<8x52xf32> -> vector<8x208xf32>
    %236 = vector.broadcast %230 : vector<1x208xf32> to vector<8x208xf32>
    %237 = arith.mulf %236, %235 : vector<8x208xf32>
    %238 = arith.addf %229, %237 : vector<8x208xf32>
    %c7 = arith.constant 7 : index
    %c240_60 = arith.constant 240 : index
    %239 = vector.load %arg4[%c7, %c240_60] : memref<9x448xf32, #tpu.memory_space<vmem>>, vector<1x208xf32>
    %240 = vector.extract_strided_slice %114 {offsets = [0, 7], sizes = [8, 52], strides = [1, 1]} : vector<8x240xf32> to vector<8x52xf32>
    %241 = vector.extract_strided_slice %114 {offsets = [0, 67], sizes = [8, 52], strides = [1, 1]} : vector<8x240xf32> to vector<8x52xf32>
    %242 = vector.extract_strided_slice %114 {offsets = [0, 127], sizes = [8, 52], strides = [1, 1]} : vector<8x240xf32> to vector<8x52xf32>
    %243 = vector.extract_strided_slice %114 {offsets = [0, 187], sizes = [8, 52], strides = [1, 1]} : vector<8x240xf32> to vector<8x52xf32>
    %244 = tpu.concatenate %240, %241, %242, %243 in 1 : vector<8x52xf32>, vector<8x52xf32>, vector<8x52xf32>, vector<8x52xf32> -> vector<8x208xf32>
    %245 = vector.broadcast %239 : vector<1x208xf32> to vector<8x208xf32>
    %246 = arith.mulf %245, %244 : vector<8x208xf32>
    %247 = arith.addf %238, %246 : vector<8x208xf32>
    %c8_61 = arith.constant 8 : index
    %c240_62 = arith.constant 240 : index
    %248 = vector.load %arg4[%c8_61, %c240_62] : memref<9x448xf32, #tpu.memory_space<vmem>>, vector<1x208xf32>
    %249 = vector.extract_strided_slice %114 {offsets = [0, 8], sizes = [8, 52], strides = [1, 1]} : vector<8x240xf32> to vector<8x52xf32>
    %250 = vector.extract_strided_slice %114 {offsets = [0, 68], sizes = [8, 52], strides = [1, 1]} : vector<8x240xf32> to vector<8x52xf32>
    %251 = vector.extract_strided_slice %114 {offsets = [0, 128], sizes = [8, 52], strides = [1, 1]} : vector<8x240xf32> to vector<8x52xf32>
    %252 = vector.extract_strided_slice %114 {offsets = [0, 188], sizes = [8, 52], strides = [1, 1]} : vector<8x240xf32> to vector<8x52xf32>
    %253 = tpu.concatenate %249, %250, %251, %252 in 1 : vector<8x52xf32>, vector<8x52xf32>, vector<8x52xf32>, vector<8x52xf32> -> vector<8x208xf32>
    %254 = vector.broadcast %248 : vector<1x208xf32> to vector<8x208xf32>
    %255 = arith.mulf %254, %253 : vector<8x208xf32>
    %256 = arith.addf %247, %255 : vector<8x208xf32>
    %c0_63 = arith.constant 0 : index
    %c88 = arith.constant 88 : index
    %257 = vector.load %arg2[%c0_63, %c88] : memref<8x96xbf16, #tpu.memory_space<vmem>>, vector<8x8xbf16>
    %258 = arith.truncf %256 : vector<8x208xf32> to vector<8x208xbf16>
    %cst_64 = arith.constant dense<0.000000e+00> : vector<8x208xf32>
    %259 = tpu.matmul %257, %258, %cst_64 {dimension_numbers = #tpu.dot_dimension_numbers<[1], [0], [0], [1], [0, 0, 1, 1], [], []>} : vector<8x8xbf16>, vector<8x208xbf16>, vector<8x208xf32> -> vector<8x208xf32>
    %c0_65 = arith.constant 0 : index
    %c5_66 = arith.constant 5 : index
    %260 = vector.load %arg3[%c0_65, %c5_66] : memref<8x6xf32, #tpu.memory_space<vmem>>, vector<8x1xf32>
    %261 = vector.broadcast %260 : vector<8x1xf32> to vector<8x208xf32>
    %262 = arith.addf %259, %261 : vector<8x208xf32>
    %263 = arith.addf %262, %176 : vector<8x208xf32>
    %c0_67 = arith.constant 0 : index
    %c0_68 = arith.constant 0 : index
    %c0_69 = arith.constant 0 : index
    %264 = vector.load %arg5[%c0_67, %c0_68, %c0_69] : memref<1x8x208xf32, #tpu.memory_space<vmem>>, vector<1x8x208xf32>
    %265 = vector.shape_cast %264 : vector<1x8x208xf32> to vector<8x208xf32>
    %266 = vector.shape_cast %263 : vector<8x208xf32> to vector<1x8x208xf32>
    tpu.vector_store %arg5[%c0_67, %c0_68, %c0_69], %266 {strides = array<i32>} : memref<1x8x208xf32, #tpu.memory_space<vmem>>, vector<1x8x208xf32>,
    return
  }
  func.func @transform_0(%arg0: i32) -> (i32, i32, i32) {
    %c0_i32 = arith.constant 0 : i32
    %c0_i32_0 = arith.constant 0 : i32
    %c0_i32_1 = arith.constant 0 : i32
    return %arg0, %c0_i32, %c0_i32_0 : i32, i32, i32
  }
  func.func @transform_1(%arg0: i32) -> (i32, i32) {
    %c0_i32 = arith.constant 0 : i32
    %c0_i32_0 = arith.constant 0 : i32
    %c0_i32_1 = arith.constant 0 : i32
    return %c0_i32, %c0_i32_0 : i32, i32
  }
  func.func @transform_2(%arg0: i32) -> (i32, i32) {
    %c0_i32 = arith.constant 0 : i32
    %c0_i32_0 = arith.constant 0 : i32
    %c0_i32_1 = arith.constant 0 : i32
    return %c0_i32, %c0_i32_0 : i32, i32
  }
  func.func @transform_3(%arg0: i32) -> (i32, i32) {
    %c0_i32 = arith.constant 0 : i32
    %c0_i32_0 = arith.constant 0 : i32
    %c0_i32_1 = arith.constant 0 : i32
    return %c0_i32, %c0_i32_0 : i32, i32
  }
  func.func @transform_4(%arg0: i32) -> (i32, i32, i32) {
    %c0_i32 = arith.constant 0 : i32
    %c0_i32_0 = arith.constant 0 : i32
    %c0_i32_1 = arith.constant 0 : i32
    return %arg0, %c0_i32, %c0_i32_0 : i32, i32, i32
  }
}

</mosaic_0001>

<llo_original>
// kernel: tpu_custom_call.1
$region0: #{tpu_custom_call.1}
  #allocation0 [shape = 'u32[]', space=smem, size = 0x4, offset = 0x4, fixed_abs, tag = 'smem constant byte address 0x4 - core index']
  #allocation1 [shape = 'u32[72,128]{1,0:T(1,128)}', space=vmem, size = 0x9000, scoped, tag = 'internal scratch']
  %s0 = inlined_call_operand.hbm [shape: f32[2,4,256], index: 0, kind: input, shape index: {}]
  %s1 = inlined_call_operand.hbm [shape: bf16[8,96], index: 1, kind: input, shape index: {}]
  %s2 = inlined_call_operand.hbm [shape: f32[8,6], index: 2, kind: input, shape index: {}]
  %s3 = inlined_call_operand.hbm [shape: f32[9,448], index: 3, kind: input, shape index: {}]
  %s4 = inlined_call_operand.hbm [shape: f32[2,8,208], index: 4, kind: output, shape index: {}]
  %s5 = sld [smem:[#allocation0]]
  $region65: #{tpu_custom_call.1} parent=0
    _
  %s7 = ssub.s32 1, %s5
  %s8 = scalar_select 0, %s7, %s5
  $region1: #{tpu_custom_call.1} parent=0
    #allocation2 [shape = 'u8[8192]{0}', space=vmem, size = 0x2000, scoped, tag = 'input window, operand 0']
    #allocation3 [shape = 's32[2]{0}', space=sflag, size = 0x8, scoped, tag = 'scoped memory for tpu_custom_call.1']
    #allocation4 [shape = 's32[2]{0}', space=sflag, size = 0x8, scoped, tag = 'scoped memory for tpu_custom_call.1']
    #allocation5 [shape = 'u8[2048]{0}', space=vmem, size = 0x800, scoped, tag = 'input window, operand 1, single buffered']
    #allocation6 [shape = 's32[1]{0}', space=sflag, size = 0x4, scoped, tag = 'scoped memory for tpu_custom_call.1']
    #allocation7 [shape = 'u8[4096]{0}', space=vmem, size = 0x1000, scoped, tag = 'input window, operand 2, single buffered']
    #allocation8 [shape = 'u8[32768]{0}', space=vmem, size = 0x8000, scoped, tag = 'input window, operand 3, single buffered']
    #allocation9 [shape = 's32[1]{0}', space=sflag, size = 0x4, scoped, tag = 'scoped memory for tpu_custom_call.1']
    #allocation10 [shape = 'u8[16384]{0}', space=vmem, size = 0x4000, scoped, tag = 'output window, operand 0']
    %9 = vsyncpa [#allocation3], 0
    %s10 = scalar_lea.sflag [#allocation3], 1
    %11 = vsyncpa %s10, 0
    %12 = vsyncpa [#allocation6], 0
    %13 = vsyncpa [#allocation9], 0
    %14 = vsyncpa [#allocation4], 0
    %s15 = scalar_lea.sflag [#allocation4], 1
    %16 = vsyncpa %s15, 0
    loop: start=0, step=1, limit=4
    $region2: #{tpu_custom_call.1} parent=1 // loop_pre_header
      _
    $region3: #{tpu_custom_call.1} parent=1 // loop_header
      %s18 = sphi 0, %s22
      %p19 = scmp.ge.s32.totalorder %s18, 4
      %s28 = sphi 0, %s30
      %s31 = sphi 0, %s28
      %s32 = sphi 0, %s31
      %s48 = sphi 0, %s32
      %s52 = sphi 0, %s52
      %s54 = sphi 0, %s52
      %s55 = sphi 0, %s54
      %s69 = sphi 0, %s55
      %s73 = sphi 0, %s73
      %s75 = sphi 0, %s73
      %s76 = sphi 0, %s75
      %s90 = sphi 0, %s76
      %s94 = sphi 0, %s94
      %s96 = sphi 0, %s94
      %s97 = sphi 0, %s96
      %s111 = sphi 0, %s97
      %s117 = sphi 0, %s119
      %s120 = sphi 0, %s117
      %s121 = sphi 0, %s120
      %s137 = sphi 0, %s121
    $region4: #{tpu_custom_call.1} parent=1 // loop_header_branch
      %21 = sbr.rel (%p19) target = $region8
    $region5: #{tpu_custom_call.1} parent=1 // loop_body
      %s23 = ssub.s32 %s18, 1
      %s24 = ssub.s32 %s18, 2
      %s25 = sadd.s32 %s18, 1
      %s26 = ssub.s32 %s18, %s25
      %p27 = scmp.eq.s32.totalorder %s26, 0
      %s29 = sadd.s32 %s28, 1
      %s30 = scalar_select %p27, %s28, %s29
      %p33 = pneg %p27
      %p34 = scmp.eq.s32.totalorder %s18, 1
      %p35 = por %p33, %p34
      %p36 = scmp.ne.s32.totalorder %s28, %s31
      %p37 = scmp.eq.s32.totalorder %s18, 0
      %p38 = por %p36, %p37
      %p39 = scmp.ne.s32.totalorder %s28, %s31
      %p40 = scmp.eq.s32.totalorder %s23, 1
      %p41 = por %p39, %p40
      %p42 = scmp.ne.s32.totalorder %s31, %s32
      %p43 = scmp.eq.s32.totalorder %s23, 0
      %p44 = por %p42, %p43
      %p45 = scmp.ne.s32.totalorder %s31, %s32
      %p46 = scmp.eq.s32.totalorder %s24, 1
      %p47 = por %p45, %p46
      %p49 = scmp.ne.s32.totalorder %s32, %s48
      %p50 = scmp.eq.s32.totalorder %s24, 0
      %p51 = por %p49, %p50
      %s53 = sadd.s32 %s52, 1
      %p56 = scmp.eq.s32.totalorder %s18, 1
      %p57 = scmp.ne.s32.totalorder %s52, %s54
      %p58 = scmp.eq.s32.totalorder %s18, 0
      %p59 = por %p57, %p58
      %p60 = scmp.ne.s32.totalorder %s52, %s54
      %p61 = scmp.eq.s32.totalorder %s23, 1
      %p62 = por %p60, %p61
      %p63 = scmp.ne.s32.totalorder %s54, %s55
      %p64 = scmp.eq.s32.totalorder %s23, 0
      %p65 = por %p63, %p64
      %p66 = scmp.ne.s32.totalorder %s54, %s55
      %p67 = scmp.eq.s32.totalorder %s24, 1
      %p68 = por %p66, %p67
      %p70 = scmp.ne.s32.totalorder %s55, %s69
      %p71 = scmp.eq.s32.totalorder %s24, 0
      %p72 = por %p70, %p71
      %s74 = sadd.s32 %s73, 1
      %p77 = scmp.eq.s32.totalorder %s18, 1
      %p78 = scmp.ne.s32.totalorder %s73, %s75
      %p79 = scmp.eq.s32.totalorder %s18, 0
      %p80 = por %p78, %p79
      %p81 = scmp.ne.s32.totalorder %s73, %s75
      %p82 = scmp.eq.s32.totalorder %s23, 1
      %p83 = por %p81, %p82
      %p84 = scmp.ne.s32.totalorder %s75, %s76
      %p85 = scmp.eq.s32.totalorder %s23, 0
      %p86 = por %p84, %p85
      %p87 = scmp.ne.s32.totalorder %s75, %s76
      %p88 = scmp.eq.s32.totalorder %s24, 1
      %p89 = por %p87, %p88
      %p91 = scmp.ne.s32.totalorder %s76, %s90
      %p92 = scmp.eq.s32.totalorder %s24, 0
      %p93 = por %p91, %p92
      %s95 = sadd.s32 %s94, 1
      %p98 = scmp.eq.s32.totalorder %s18, 1
      %p99 = scmp.ne.s32.totalorder %s94, %s96
      %p100 = scmp.eq.s32.totalorder %s18, 0
      %p101 = por %p99, %p100
      %p102 = scmp.ne.s32.totalorder %s94, %s96
      %p103 = scmp.eq.s32.totalorder %s23, 1
      %p104 = por %p102, %p103
      %p105 = scmp.ne.s32.totalorder %s96, %s97
      %p106 = scmp.eq.s32.totalorder %s23, 0
      %p107 = por %p105, %p106
      %p108 = scmp.ne.s32.totalorder %s96, %s97
      %p109 = scmp.eq.s32.totalorder %s24, 1
      %p110 = por %p108, %p109
      %p112 = scmp.ne.s32.totalorder %s97, %s111
      %p113 = scmp.eq.s32.totalorder %s24, 0
      %p114 = por %p112, %p113
      %s115 = ssub.s32 %s18, %s25
      %p116 = scmp.eq.s32.totalorder %s115, 0
      %s118 = sadd.s32 %s117, 1
      %s119 = scalar_select %p116, %s117, %s118
      %p122 = pneg %p116
      %p123 = scmp.eq.s32.totalorder %s18, 1
      %p124 = por %p122, %p123
      %p125 = scmp.ne.s32.totalorder %s117, %s120
      %p126 = scmp.eq.s32.totalorder %s18, 0
      %p127 = por %p125, %p126
      %p128 = scmp.ne.s32.totalorder %s117, %s120
      %p129 = scmp.eq.s32.totalorder %s23, 1
      %p130 = por %p128, %p129
      %p131 = scmp.ne.s32.totalorder %s120, %s121
      %p132 = scmp.eq.s32.totalorder %s23, 0
      %p133 = por %p131, %p132
      %p134 = scmp.ne.s32.totalorder %s120, %s121
      %p135 = scmp.eq.s32.totalorder %s24, 1
      %p136 = por %p134, %p135
      %p138 = scmp.ne.s32.totalorder %s121, %s137
      %p139 = scmp.eq.s32.totalorder %s24, 0
      %p140 = por %p138, %p139
      %p141 = scmp.le.s32.totalorder 1, %s18
      %p142 = scmp.lt.s32.totalorder %s18, 3
      %p143 = pnand %p141, %p142
      %p144 = pneg %p143
      // Predicated region
      $region9: #{tpu_custom_call.1} parent=5 // pred_check
        _
      $region10: #{tpu_custom_call.1} parent=5 // pred_check_branch
        %146 = sbr.rel (%p143) target = $region12
      $region11: #{tpu_custom_call.1} parent=5 // pred_region
        %s147 = ssub.s32 %s18, 1
        // Predicated region
        $region13: #{tpu_custom_call.1} parent=11 // pred_check
          %p148 = pneg %p65
        $region14: #{tpu_custom_call.1} parent=11 // pred_check_branch
          %150 = sbr.rel (%p148) target = $region16
        $region15: #{tpu_custom_call.1} parent=11 // pred_region
          %152 = vsyncadd [#allocation6], 0
          %s154 = sshll.u32 %s1, 4
          %s155 = int_to_ptr.hbm [resolvable:$true] %s154
          %s156 = sshll.u32 [#allocation5], 4
          %s157 = int_to_ptr.vmem [resolvable:$true] %s156
          %159 = dma.hbm_to_vmem [thread:$0]  %s155, 64, %s157, [#allocation6]
        $region16: #{tpu_custom_call.1} parent=11 // pred_fallthru
          _
        // Predicated region
        $region17: #{tpu_custom_call.1} parent=11 // pred_check
          %p160 = pneg %p86
        $region18: #{tpu_custom_call.1} parent=11 // pred_check_branch
          %162 = sbr.rel (%p160) target = $region20
        $region19: #{tpu_custom_call.1} parent=11 // pred_region
          %164 = vsyncadd [#allocation6], 0
          %s166 = sshll.u32 %s2, 4
          %s167 = int_to_ptr.hbm [resolvable:$true] %s166
          %s168 = sshll.u32 [#allocation7], 4
          %s169 = int_to_ptr.vmem [resolvable:$true] %s168
          %171 = dma.hbm_to_vmem [thread:$0]  %s167, 128, %s169, [#allocation6]
        $region20: #{tpu_custom_call.1} parent=11 // pred_fallthru
          _
        // Predicated region
        $region21: #{tpu_custom_call.1} parent=11 // pred_check
          %p172 = pneg %p107
        $region22: #{tpu_custom_call.1} parent=11 // pred_check_branch
          %174 = sbr.rel (%p172) target = $region24
        $region23: #{tpu_custom_call.1} parent=11 // pred_region
          %176 = vsyncadd [#allocation9], 0
          %s177 = sshll.u32 %s3, 4
          %s178 = int_to_ptr.hbm [resolvable:$true] %s177
          %s179 = sshll.u32 [#allocation8], 4
          %s180 = int_to_ptr.vmem [resolvable:$true] %s179
          %185 = dma.hbm_to_vmem [thread:$0]  %s178, 1024, %s180, [#allocation9], 512, 512, 32
        $region24: #{tpu_custom_call.1} parent=11 // pred_fallthru
          _
      $region12: #{tpu_custom_call.1} parent=5 // pred_fallthru
        _
      %p186 = scmp.lt.s32.totalorder %s18, 2
      // Predicated region
      $region25: #{tpu_custom_call.1} parent=5 // pred_check
        %p187 = pneg %p186
      $region26: #{tpu_custom_call.1} parent=5 // pred_check_branch
        %189 = sbr.rel (%p187) target = $region28
      $region27: #{tpu_custom_call.1} parent=5 // pred_region
        // Predicated region
        $region29: #{tpu_custom_call.1} parent=27 // pred_check
          %p190 = pneg %p38
        $region30: #{tpu_custom_call.1} parent=27 // pred_check_branch
          %192 = sbr.rel (%p190) target = $region32
        $region31: #{tpu_custom_call.1} parent=27 // pred_region
          %s193 = sand.u32 %s28, 1
          %s194 = scalar_lea.sflag [#allocation3], %s193
          %s195 = sand.u32 %s28, 1
          %s196 = smul.addr %s195, 8
          %s197 = scalar_lea.vmem [#allocation2], %s196
          %199 = vsyncadd %s194, 0
          %s200 = smul.addr %s18, 2
          %s201 = smul.addr %s200, 4
          %s202 = scalar_lea.hbm %s0, %s201
          %s204 = sshll.u32 %s202, 4
          %s205 = int_to_ptr.hbm [resolvable:$true] %s204
          %s206 = sshll.u32 %s197, 4
          %s207 = int_to_ptr.vmem [resolvable:$true] %s206
          %209 = dma.hbm_to_vmem [thread:$0]  %s205, 128, %s207, %s194
        $region32: #{tpu_custom_call.1} parent=27 // pred_fallthru
          _
      $region28: #{tpu_custom_call.1} parent=5 // pred_fallthru
        _
      %p210 = scmp.le.s32.totalorder 1, %s18
      %p211 = scmp.lt.s32.totalorder %s18, 3
      %p212 = pnand %p210, %p211
      %p213 = pneg %p212
      // Predicated region
      $region33: #{tpu_custom_call.1} parent=5 // pred_check
        _
      $region34: #{tpu_custom_call.1} parent=5 // pred_check_branch
        %215 = sbr.rel (%p212) target = $region36
      $region35: #{tpu_custom_call.1} parent=5 // pred_region
        %s216 = ssub.s32 %s18, 1
        %s217 = sand.u32 %s31, 1
        %s218 = scalar_lea.sflag [#allocation3], %s217
        %s219 = sand.u32 %s31, 1
        %s220 = smul.addr %s219, 8
        %s221 = scalar_lea.vmem [#allocation2], %s220
        // Predicated region
        $region37: #{tpu_custom_call.1} parent=35 // pred_check
          %p222 = pneg %p44
        $region38: #{tpu_custom_call.1} parent=35 // pred_check_branch
          %224 = sbr.rel (%p222) target = $region40
        $region39: #{tpu_custom_call.1} parent=35 // pred_region
          %226 = dma.done %s218, 128
        $region40: #{tpu_custom_call.1} parent=35 // pred_fallthru
          _
        // Predicated region
        $region41: #{tpu_custom_call.1} parent=35 // pred_check
          %p227 = pneg %p65
        $region42: #{tpu_custom_call.1} parent=35 // pred_check_branch
          %229 = sbr.rel (%p227) target = $region44
        $region43: #{tpu_custom_call.1} parent=35 // pred_region
          %231 = dma.done [#allocation6], 64
        $region44: #{tpu_custom_call.1} parent=35 // pred_fallthru
          _
        // Predicated region
        $region45: #{tpu_custom_call.1} parent=35 // pred_check
          %p232 = pneg %p86
        $region46: #{tpu_custom_call.1} parent=35 // pred_check_branch
          %234 = sbr.rel (%p232) target = $region48
        $region47: #{tpu_custom_call.1} parent=35 // pred_region
          %236 = dma.done [#allocation6], 128
        $region48: #{tpu_custom_call.1} parent=35 // pred_fallthru
          _
        // Predicated region
        $region49: #{tpu_custom_call.1} parent=35 // pred_check
          %p237 = pneg %p107
        $region50: #{tpu_custom_call.1} parent=35 // pred_check_branch
          %239 = sbr.rel (%p237) target = $region52
        $region51: #{tpu_custom_call.1} parent=35 // pred_region
          %241 = dma.done [#allocation9], 1024
        $region52: #{tpu_custom_call.1} parent=35 // pred_fallthru
          _
        %s242 = sand.u32 %s31, 1
        %s243 = scalar_lea.sflag [#allocation3], %s242
        %s244 = sand.u32 %s31, 1
        %s245 = smul.addr %s244, 8
        %s246 = scalar_lea.vmem [#allocation2], %s245
        %p247 = pneg %p44
        %p248 = pneg %p41
        %p249 = pneg %p65
        %p250 = pneg %p62
        %p251 = pneg %p86
        %p252 = pneg %p83
        %p253 = pneg %p107
        %p254 = pneg %p104
        %p255 = pneg %p133
        %p256 = pneg %p130
        %s257 = sand.u32 %s120, 1
        %s258 = scalar_lea.sflag [#allocation4], %s257
        %s259 = sand.u32 %s120, 1
        %s260 = smul.addr %s259, 16
        %s261 = scalar_lea.vmem [#allocation10], %s260
        %v263 = vld [vmem:[%s221] sm:$0xff]
        %v264 = vld [vmem:[#allocation5] sm:$0xf]
        %266 = vst [vmem:[#allocation1] ss:$2 sm:$0xff] %v263
        %v267 = vld.sshfl [vmem:[#allocation1] sm:$0xff pattern:$0x75316420]
        %268 = vrot.lane.b32.xlu0 %v267, 126
        %v269 = vpop.permute.xlu0 %268
        %271 = vst [vmem:[#allocation1] ss:$2 sm:$0xff] %v263
        %v272 = vld.sshfl [vmem:[#allocation1 + $0x8] sm:$0xff pattern:$0x75316420]
        %273 = vrot.lane.b32.xlu0 %v272, 124
        %v274 = vpop.permute.xlu0 %273
        %276 = vst [vmem:[#allocation1] ss:$2 sm:$0xff] %v263
        %v277 = vld.sshfl [vmem:[#allocation1 + $0x8] sm:$0xff pattern:$0x75316420]
        %278 = vrot.lane.b32.xlu0 %v277, 122
        %v279 = vpop.permute.xlu0 %278
        %vm281 = vcmask 506880
        %v282 = vsel %vm281, %v263, %v269
        %vm283 = vcmask 1014784
        %v284 = vsel %vm283, %v282, %v274
        %vm285 = vcmask 474112
        %v286 = vsel %vm285, %v274, %v279
        %v287 = vpack.c.bf16 %v284, %v284
        %v288 = vpack.c.bf16 %v286, %v286
        %v289 = vld [vmem:[#allocation5] sm:$0xf]
        %290 = vst [vmem:[#allocation1] ss:$2 sm:$0xff] %v263
        %v291 = vld.sshfl [vmem:[#allocation1] sm:$0xff pattern:$0x75316420]
        %292 = vrot.lane.b32.xlu0 %v291, 127
        %v293 = vpop.permute.xlu0 %292
        %295 = vst [vmem:[#allocation1] ss:$2 sm:$0xff] %v263
        %v296 = vld.sshfl [vmem:[#allocation1] sm:$0xff pattern:$0x75316420]
        %297 = vrot.lane.b32.xlu0 %v296, 125
        %v298 = vpop.permute.xlu0 %297
        %300 = vst [vmem:[#allocation1] ss:$2 sm:$0xff] %v263
        %v301 = vld.sshfl [vmem:[#allocation1 + $0x8] sm:$0xff pattern:$0x75316420]
        %302 = vrot.lane.b32.xlu0 %v301, 123
        %v303 = vpop.permute.xlu0 %302
        %305 = vst [vmem:[#allocation1] ss:$2 sm:$0xff] %v263
        %v306 = vld.sshfl [vmem:[#allocation1 + $0x8] sm:$0xff pattern:$0x75316420]
        %307 = vrot.lane.b32.xlu0 %v306, 121
        %v308 = vpop.permute.xlu0 %307
        %v310 = vsel %vm281, %v293, %v298
        %v311 = vsel %vm283, %v310, %v303
        %v312 = vsel %vm285, %v303, %v308
        %v313 = vpack.c.bf16 %v311, %v311
        %v314 = vpack.c.bf16 %v312, %v312
        %v316 = vunpack.c.l.b16 %v289
        %v317 = vpack.c.b16 %v316, %v316
        %318 = vrot.lane.b32.xlu0 %v317, 124
        %v319 = vpop.permute.xlu0 %318
        %vm320 = vcmask 31744
        %v322 = vsel %vm320, %v319, 0
        %vm324 = vcmask 1041408
        %v326 = vsel %vm324, %v313, 0
        %v329 = vsel %vm324, %v314, 0
        %331 = vmatpush.bf16.msra.mxu0 0
        %332 = vmatpush.bf16.msra.mxu0 0
        %333 = vmatpush.bf16.msra.mxu0 0
        %334 = vmatpush.bf16.msra.mxu0 0
        %335 = vmatpush.bf16.msra.mxu0 0
        %336 = vmatpush.bf16.msra.mxu0 0
        %337 = vmatpush.bf16.msra.mxu0 0
        %338 = vmatpush.bf16.msra.mxu0 %v326
        %339 = vmatmul.bf16.gmra.mxu0 %v322
        %v340 = vpop.f32.mrf.mxu0
        %v341 = vadd.f32 0.0, %v340
        %v342 = vpop.f32.mrf.mxu0
        %343 = vdwg.mxu0
        %344 = vmatpush.bf16.msra.mxu0 0
        %345 = vmatpush.bf16.msra.mxu0 0
        %346 = vmatpush.bf16.msra.mxu0 0
        %347 = vmatpush.bf16.msra.mxu0 0
        %348 = vmatpush.bf16.msra.mxu0 0
        %349 = vmatpush.bf16.msra.mxu0 0
        %350 = vmatpush.bf16.msra.mxu0 0
        %351 = vmatpush.bf16.msra.mxu0 %v329
        %352 = vmatmul.bf16.gmra.mxu0 %v322
        %v353 = vpop.f32.mrf.mxu0
        %v354 = vadd.f32 0.0, %v353
        %v355 = vpop.f32.mrf.mxu0
        %356 = vdwg.mxu0
        %v358 = vsel %vm320, %v264, 0
        %v361 = vsel %vm324, %v287, 0
        %v364 = vsel %vm324, %v288, 0
        %366 = vmatpush.bf16.msra.mxu0 0
        %367 = vmatpush.bf16.msra.mxu0 0
        %368 = vmatpush.bf16.msra.mxu0 0
        %369 = vmatpush.bf16.msra.mxu0 0
        %370 = vmatpush.bf16.msra.mxu0 0
        %371 = vmatpush.bf16.msra.mxu0 0
        %372 = vmatpush.bf16.msra.mxu0 0
        %373 = vmatpush.bf16.msra.mxu0 %v361
        %374 = vmatmul.bf16.gmra.mxu0 %v358
        %v375 = vpop.f32.mrf.mxu0
        %v376 = vadd.f32 %v341, %v375
        %v377 = vpop.f32.mrf.mxu0
        %378 = vdwg.mxu0
        %379 = vmatpush.bf16.msra.mxu0 0
        %380 = vmatpush.bf16.msra.mxu0 0
        %381 = vmatpush.bf16.msra.mxu0 0
        %382 = vmatpush.bf16.msra.mxu0 0
        %383 = vmatpush.bf16.msra.mxu0 0
        %384 = vmatpush.bf16.msra.mxu0 0
        %385 = vmatpush.bf16.msra.mxu0 0
        %386 = vmatpush.bf16.msra.mxu0 %v364
        %387 = vmatmul.bf16.gmra.mxu0 %v358
        %v388 = vpop.f32.mrf.mxu0
        %v389 = vadd.f32 %v354, %v388
        %v390 = vpop.f32.mrf.mxu0
        %391 = vdwg.mxu0
        %v392 = vld [vmem:[#allocation5] sm:$0xf]
        %393 = vst [vmem:[#allocation1] ss:$2 sm:$0xff] %v263
        %v394 = vld.sshfl [vmem:[#allocation1] sm:$0xff pattern:$0x75316420]
        %395 = vrot.lane.b32.xlu0 %v394, 126
        %v396 = vpop.permute.xlu0 %395
        %398 = vst [vmem:[#allocation1] ss:$2 sm:$0xff] %v263
        %v399 = vld.sshfl [vmem:[#allocation1] sm:$0xff pattern:$0x75316420]
        %400 = vrot.lane.b32.xlu0 %v399, 124
        %v401 = vpop.permute.xlu0 %400
        %403 = vst [vmem:[#allocation1] ss:$2 sm:$0xff] %v263
        %v404 = vld.sshfl [vmem:[#allocation1 + $0x8] sm:$0xff pattern:$0x75316420]
        %405 = vrot.lane.b32.xlu0 %v404, 122
        %v406 = vpop.permute.xlu0 %405
        %408 = vst [vmem:[#allocation1] ss:$2 sm:$0xff] %v263
        %v409 = vld.sshfl [vmem:[#allocation1 + $0x8] sm:$0xff pattern:$0x75316420]
        %410 = vrot.lane.b32.xlu0 %v409, 120
        %v411 = vpop.permute.xlu0 %410
        %v413 = vsel %vm281, %v396, %v401
        %v414 = vsel %vm283, %v413, %v406
        %v415 = vsel %vm285, %v406, %v411
        %v416 = vpack.c.bf16 %v414, %v414
        %v417 = vpack.c.bf16 %v415, %v415
        %v419 = vunpack.c.l.b16 %v392
        %v420 = vpack.c.b16 %v419, %v419
        %421 = vrot.lane.b32.xlu0 %v420, 120
        %v422 = vpop.permute.xlu0 %421
        %v424 = vsel %vm320, %v422, 0
        %v427 = vsel %vm324, %v416, 0
        %v430 = vsel %vm324, %v417, 0
        %432 = vmatpush.bf16.msra.mxu0 0
        %433 = vmatpush.bf16.msra.mxu0 0
        %434 = vmatpush.bf16.msra.mxu0 0
        %435 = vmatpush.bf16.msra.mxu0 0
        %436 = vmatpush.bf16.msra.mxu0 0
        %437 = vmatpush.bf16.msra.mxu0 0
        %438 = vmatpush.bf16.msra.mxu0 0
        %439 = vmatpush.bf16.msra.mxu0 %v427
        %440 = vmatmul.bf16.gmra.mxu0 %v424
        %v441 = vpop.f32.mrf.mxu0
        %v442 = vadd.f32 0.0, %v441
        %v443 = vpop.f32.mrf.mxu0
        %444 = vdwg.mxu0
        %445 = vmatpush.bf16.msra.mxu0 0
        %446 = vmatpush.bf16.msra.mxu0 0
        %447 = vmatpush.bf16.msra.mxu0 0
        %448 = vmatpush.bf16.msra.mxu0 0
        %449 = vmatpush.bf16.msra.mxu0 0
        %450 = vmatpush.bf16.msra.mxu0 0
        %451 = vmatpush.bf16.msra.mxu0 0
        %452 = vmatpush.bf16.msra.mxu0 %v430
        %453 = vmatmul.bf16.gmra.mxu0 %v424
        %v454 = vpop.f32.mrf.mxu0
        %v455 = vadd.f32 0.0, %v454
        %v456 = vpop.f32.mrf.mxu0
        %457 = vdwg.mxu0
        %v458 = vadd.f32 %v376, %v442
        %v459 = vadd.f32 %v389, %v455
        %v460 = vld [vmem:[#allocation7] sm:$0xff]
        %462 = vset.pattern.permute.xlu0 0
        %463 = vperm.xlu0 %462, %v460
        %v464 = vpop.permute.xlu0 %463
        %v466 = vadd.f32 %v458, %v464
        %v467 = vadd.f32 %v459, %v464
        %v468 = vmax.f32 %v466, 0.0
        %v469 = vmax.f32 %v467, 0.0
        %v470 = vld [vmem:[#allocation5] sm:$0xf]
        %472 = vrot.lane.b32.xlu0 %v468, 126
        %v473 = vpop.permute.xlu0 %472
        %476 = vrot.lane.b32.xlu0 %v468, 124
        %v477 = vpop.permute.xlu0 %476
        %478 = vrot.lane.b32.xlu0 %v469, 124
        %v479 = vpop.permute.xlu0 %478
        %v480 = vsel %vm283, %v477, %v479
        %483 = vrot.lane.b32.xlu0 %v469, 122
        %v484 = vpop.permute.xlu0 %483
        %vm486 = vcmask 490496
        %v487 = vsel %vm486, %v468, %v473
        %vm488 = vcmask 982016
        %v489 = vsel %vm488, %v487, %v480
        %vm490 = vcmask 424960
        %v491 = vsel %vm490, %v479, %v484
        %v492 = vpack.c.bf16 %v489, %v489
        %v493 = vpack.c.bf16 %v491, %v491
        %494 = vrot.lane.b32.xlu0 %v468, 127
        %v495 = vpop.permute.xlu0 %494
        %497 = vrot.lane.b32.xlu0 %v468, 125
        %v498 = vpop.permute.xlu0 %497
        %500 = vrot.lane.b32.xlu0 %v468, 123
        %v501 = vpop.permute.xlu0 %500
        %502 = vrot.lane.b32.xlu0 %v469, 123
        %v503 = vpop.permute.xlu0 %502
        %vm504 = vcmask 1006592
        %v505 = vsel %vm504, %v501, %v503
        %508 = vrot.lane.b32.xlu0 %v469, 121
        %v509 = vpop.permute.xlu0 %508
        %v511 = vsel %vm486, %v495, %v498
        %v512 = vsel %vm488, %v511, %v505
        %v513 = vsel %vm490, %v503, %v509
        %v514 = vpack.c.bf16 %v512, %v512
        %v515 = vpack.c.bf16 %v513, %v513
        %v517 = vunpack.c.l.b16 %v470
        %v518 = vpack.c.b16 %v517, %v517
        %519 = vrot.lane.b32.xlu0 %v518, 108
        %v520 = vpop.permute.xlu0 %519
        %vm521 = vcmask 64512
        %v523 = vsel %vm521, %v520, 0
        %vm525 = vcmask 1043456
        %v527 = vsel %vm525, %v514, 0
        %v530 = vsel %vm525, %v515, 0
        %532 = vmatpush.bf16.msra.mxu0 0
        %533 = vmatpush.bf16.msra.mxu0 0
        %534 = vmatpush.bf16.msra.mxu0 0
        %535 = vmatpush.bf16.msra.mxu0 0
        %536 = vmatpush.bf16.msra.mxu0 0
        %537 = vmatpush.bf16.msra.mxu0 0
        %538 = vmatpush.bf16.msra.mxu0 0
        %539 = vmatpush.bf16.msra.mxu0 %v527
        %540 = vmatmul.bf16.gmra.mxu0 %v523
        %v541 = vpop.f32.mrf.mxu0
        %v542 = vadd.f32 0.0, %v541
        %v543 = vpop.f32.mrf.mxu0
        %544 = vdwg.mxu0
        %545 = vmatpush.bf16.msra.mxu0 0
        %546 = vmatpush.bf16.msra.mxu0 0
        %547 = vmatpush.bf16.msra.mxu0 0
        %548 = vmatpush.bf16.msra.mxu0 0
        %549 = vmatpush.bf16.msra.mxu0 0
        %550 = vmatpush.bf16.msra.mxu0 0
        %551 = vmatpush.bf16.msra.mxu0 0
        %552 = vmatpush.bf16.msra.mxu0 %v530
        %553 = vmatmul.bf16.gmra.mxu0 %v523
        %v554 = vpop.f32.mrf.mxu0
        %v555 = vadd.f32 0.0, %v554
        %v556 = vpop.f32.mrf.mxu0
        %557 = vdwg.mxu0
        %558 = vrot.lane.b32.xlu0 %v518, 116
        %v559 = vpop.permute.xlu0 %558
        %v561 = vsel %vm521, %v559, 0
        %v564 = vsel %vm525, %v492, 0
        %v567 = vsel %vm525, %v493, 0
        %569 = vmatpush.bf16.msra.mxu0 0
        %570 = vmatpush.bf16.msra.mxu0 0
        %571 = vmatpush.bf16.msra.mxu0 0
        %572 = vmatpush.bf16.msra.mxu0 0
        %573 = vmatpush.bf16.msra.mxu0 0
        %574 = vmatpush.bf16.msra.mxu0 0
        %575 = vmatpush.bf16.msra.mxu0 0
        %576 = vmatpush.bf16.msra.mxu0 %v564
        %577 = vmatmul.bf16.gmra.mxu0 %v561
        %v578 = vpop.f32.mrf.mxu0
        %v579 = vadd.f32 %v542, %v578
        %v580 = vpop.f32.mrf.mxu0
        %581 = vdwg.mxu0
        %582 = vmatpush.bf16.msra.mxu0 0
        %583 = vmatpush.bf16.msra.mxu0 0
        %584 = vmatpush.bf16.msra.mxu0 0
        %585 = vmatpush.bf16.msra.mxu0 0
        %586 = vmatpush.bf16.msra.mxu0 0
        %587 = vmatpush.bf16.msra.mxu0 0
        %588 = vmatpush.bf16.msra.mxu0 0
        %589 = vmatpush.bf16.msra.mxu0 %v567
        %590 = vmatmul.bf16.gmra.mxu0 %v561
        %v591 = vpop.f32.mrf.mxu0
        %v592 = vadd.f32 %v555, %v591
        %v593 = vpop.f32.mrf.mxu0
        %594 = vdwg.mxu0
        %596 = vrot.lane.b32.xlu0 %v468, 122
        %v597 = vpop.permute.xlu0 %596
        %vm598 = vcmask 998400
        %v599 = vsel %vm598, %v597, %v484
        %601 = vrot.lane.b32.xlu0 %v469, 120
        %v602 = vpop.permute.xlu0 %601
        %v604 = vsel %vm486, %v473, %v477
        %v605 = vsel %vm488, %v604, %v599
        %v606 = vsel %vm490, %v484, %v602
        %v607 = vpack.c.bf16 %v605, %v605
        %v608 = vpack.c.bf16 %v606, %v606
        %609 = vrot.lane.b32.xlu0 %v518, 100
        %v610 = vpop.permute.xlu0 %609
        %v612 = vsel %vm521, %v610, 0
        %v615 = vsel %vm525, %v607, 0
        %v618 = vsel %vm525, %v608, 0
        %620 = vmatpush.bf16.msra.mxu0 0
        %621 = vmatpush.bf16.msra.mxu0 0
        %622 = vmatpush.bf16.msra.mxu0 0
        %623 = vmatpush.bf16.msra.mxu0 0
        %624 = vmatpush.bf16.msra.mxu0 0
        %625 = vmatpush.bf16.msra.mxu0 0
        %626 = vmatpush.bf16.msra.mxu0 0
        %627 = vmatpush.bf16.msra.mxu0 %v615
        %628 = vmatmul.bf16.gmra.mxu0 %v612
        %v629 = vpop.f32.mrf.mxu0
        %v630 = vadd.f32 0.0, %v629
        %v631 = vpop.f32.mrf.mxu0
        %632 = vdwg.mxu0
        %633 = vmatpush.bf16.msra.mxu0 0
        %634 = vmatpush.bf16.msra.mxu0 0
        %635 = vmatpush.bf16.msra.mxu0 0
        %636 = vmatpush.bf16.msra.mxu0 0
        %637 = vmatpush.bf16.msra.mxu0 0
        %638 = vmatpush.bf16.msra.mxu0 0
        %639 = vmatpush.bf16.msra.mxu0 0
        %640 = vmatpush.bf16.msra.mxu0 %v618
        %641 = vmatmul.bf16.gmra.mxu0 %v612
        %v642 = vpop.f32.mrf.mxu0
        %v643 = vadd.f32 0.0, %v642
        %v644 = vpop.f32.mrf.mxu0
        %645 = vdwg.mxu0
        %v646 = vadd.f32 %v579, %v630
        %v647 = vadd.f32 %v592, %v643
        %648 = vset.pattern.permute.xlu0 1
        %649 = vperm.xlu0 %648, %v460
        %v650 = vpop.permute.xlu0 %649
        %v652 = vadd.f32 %v646, %v650
        %v653 = vadd.f32 %v647, %v650
        %v654 = vmax.f32 %v652, 0.0
        %v655 = vmax.f32 %v653, 0.0
        %v656 = vld [vmem:[#allocation8] ss:$8 sm:$0x3]
        %657 = vst [vmem:[#allocation1] ss:$2 sm:$0xff] %v263
        %v658 = vld.sshfl [vmem:[#allocation1] sm:$0xff pattern:$0x75316420]
        %659 = vrot.lane.b32.xlu0 %v658, 124
        %v660 = vpop.permute.xlu0 %659
        %662 = vst [vmem:[#allocation1] ss:$2 sm:$0xff] %v263
        %v663 = vld.sshfl [vmem:[#allocation1 + $0x8] sm:$0xff pattern:$0x75316420]
        %664 = vrot.lane.b32.xlu0 %v663, 120
        %v665 = vpop.permute.xlu0 %664
        %667 = vst [vmem:[#allocation1] ss:$2 sm:$0xff] %v263
        %v668 = vld.sshfl [vmem:[#allocation1 + $0x8] sm:$0xff pattern:$0x75316420]
        %669 = vrot.lane.b32.xlu0 %v668, 116
        %v670 = vpop.permute.xlu0 %669
        %v672 = vsel %vm486, %v263, %v660
        %v673 = vsel %vm488, %v672, %v665
        %v674 = vsel %vm490, %v665, %v670
        %v676 = vperm.slane %v656, 0
        %v677 = vperm.slane %v656, 1
        %v680 = vmul.f32 %v676, %v673
        %v681 = vmul.f32 %v677, %v674
        %s682 = scalar_lea.vmem [#allocation8], 1
        %v683 = vld [vmem:[%s682] ss:$8 sm:$0x3]
        %684 = vst [vmem:[#allocation1] ss:$2 sm:$0xff] %v263
        %v685 = vld.sshfl [vmem:[#allocation1] sm:$0xff pattern:$0x75316420]
        %686 = vrot.lane.b32.xlu0 %v685, 127
        %v687 = vpop.permute.xlu0 %686
        %689 = vst [vmem:[#allocation1] ss:$2 sm:$0xff] %v263
        %v690 = vld.sshfl [vmem:[#allocation1] sm:$0xff pattern:$0x75316420]
        %691 = vrot.lane.b32.xlu0 %v690, 123
        %v692 = vpop.permute.xlu0 %691
        %694 = vst [vmem:[#allocation1] ss:$2 sm:$0xff] %v263
        %v695 = vld.sshfl [vmem:[#allocation1 + $0x8] sm:$0xff pattern:$0x75316420]
        %696 = vrot.lane.b32.xlu0 %v695, 119
        %v697 = vpop.permute.xlu0 %696
        %699 = vst [vmem:[#allocation1] ss:$2 sm:$0xff] %v263
        %v700 = vld.sshfl [vmem:[#allocation1 + $0x8] sm:$0xff pattern:$0x75316420]
        %701 = vrot.lane.b32.xlu0 %v700, 115
        %v702 = vpop.permute.xlu0 %701
        %v704 = vsel %vm486, %v687, %v692
        %v705 = vsel %vm488, %v704, %v697
        %v706 = vsel %vm490, %v697, %v702
        %v708 = vperm.slane %v683, 0
        %v709 = vperm.slane %v683, 1
        %v712 = vmul.f32 %v708, %v705
        %v713 = vmul.f32 %v709, %v706
        %v714 = vadd.f32 %v680, %v712
        %v715 = vadd.f32 %v681, %v713
        %s716 = scalar_lea.vmem [#allocation8], 2
        %v717 = vld [vmem:[%s716] ss:$8 sm:$0x3]
        %718 = vst [vmem:[#allocation1] ss:$2 sm:$0xff] %v263
        %v719 = vld.sshfl [vmem:[#allocation1] sm:$0xff pattern:$0x75316420]
        %720 = vrot.lane.b32.xlu0 %v719, 126
        %v721 = vpop.permute.xlu0 %720
        %723 = vst [vmem:[#allocation1] ss:$2 sm:$0xff] %v263
        %v724 = vld.sshfl [vmem:[#allocation1] sm:$0xff pattern:$0x75316420]
        %725 = vrot.lane.b32.xlu0 %v724, 122
        %v726 = vpop.permute.xlu0 %725
        %728 = vst [vmem:[#allocation1] ss:$2 sm:$0xff] %v263
        %v729 = vld.sshfl [vmem:[#allocation1 + $0x8] sm:$0xff pattern:$0x75316420]
        %730 = vrot.lane.b32.xlu0 %v729, 118
        %v731 = vpop.permute.xlu0 %730
        %733 = vst [vmem:[#allocation1] ss:$2 sm:$0xff] %v263
        %v734 = vld.sshfl [vmem:[#allocation1 + $0x8] sm:$0xff pattern:$0x75316420]
        %735 = vrot.lane.b32.xlu0 %v734, 114
        %v736 = vpop.permute.xlu0 %735
        %v738 = vsel %vm486, %v721, %v726
        %v739 = vsel %vm488, %v738, %v731
        %v740 = vsel %vm490, %v731, %v736
        %v742 = vperm.slane %v717, 0
        %v743 = vperm.slane %v717, 1
        %v746 = vmul.f32 %v742, %v739
        %v747 = vmul.f32 %v743, %v740
        %v748 = vadd.f32 %v714, %v746
        %v749 = vadd.f32 %v715, %v747
        %s750 = scalar_lea.vmem [#allocation8], 3
        %v751 = vld [vmem:[%s750] ss:$8 sm:$0x3]
        %752 = vst [vmem:[#allocation1] ss:$2 sm:$0xff] %v263
        %v753 = vld.sshfl [vmem:[#allocation1] sm:$0xff pattern:$0x75316420]
        %754 = vrot.lane.b32.xlu0 %v753, 125
        %v755 = vpop.permute.xlu0 %754
        %757 = vst [vmem:[#allocation1] ss:$2 sm:$0xff] %v263
        %v758 = vld.sshfl [vmem:[#allocation1] sm:$0xff pattern:$0x75316420]
        %759 = vrot.lane.b32.xlu0 %v758, 121
        %v760 = vpop.permute.xlu0 %759
        %762 = vst [vmem:[#allocation1] ss:$2 sm:$0xff] %v263
        %v763 = vld.sshfl [vmem:[#allocation1 + $0x8] sm:$0xff pattern:$0x75316420]
        %764 = vrot.lane.b32.xlu0 %v763, 117
        %v765 = vpop.permute.xlu0 %764
        %767 = vst [vmem:[#allocation1] ss:$2 sm:$0xff] %v263
        %v768 = vld.sshfl [vmem:[#allocation1 + $0x8] sm:$0xff pattern:$0x75316420]
        %769 = vrot.lane.b32.xlu0 %v768, 113
        %v770 = vpop.permute.xlu0 %769
        %v772 = vsel %vm486, %v755, %v760
        %v773 = vsel %vm488, %v772, %v765
        %v774 = vsel %vm490, %v765, %v770
        %v776 = vperm.slane %v751, 0
        %v777 = vperm.slane %v751, 1
        %v780 = vmul.f32 %v776, %v773
        %v781 = vmul.f32 %v777, %v774
        %v782 = vadd.f32 %v748, %v780
        %v783 = vadd.f32 %v749, %v781
        %s784 = scalar_lea.vmem [#allocation8], 4
        %v785 = vld [vmem:[%s784] ss:$8 sm:$0x3]
        %786 = vst [vmem:[#allocation1] ss:$2 sm:$0xff] %v263
        %v787 = vld.sshfl [vmem:[#allocation1] sm:$0xff pattern:$0x75316420]
        %788 = vrot.lane.b32.xlu0 %v787, 124
        %v789 = vpop.permute.xlu0 %788
        %791 = vst [vmem:[#allocation1] ss:$2 sm:$0xff] %v263
        %v792 = vld.sshfl [vmem:[#allocation1] sm:$0xff pattern:$0x75316420]
        %793 = vrot.lane.b32.xlu0 %v792, 120
        %v794 = vpop.permute.xlu0 %793
        %796 = vst [vmem:[#allocation1] ss:$2 sm:$0xff] %v263
        %v797 = vld.sshfl [vmem:[#allocation1 + $0x8] sm:$0xff pattern:$0x75316420]
        %798 = vrot.lane.b32.xlu0 %v797, 116
        %v799 = vpop.permute.xlu0 %798
        %801 = vst [vmem:[#allocation1] ss:$2 sm:$0xff] %v263
        %v802 = vld.sshfl [vmem:[#allocation1 + $0x8] sm:$0xff pattern:$0x75316420]
        %803 = vrot.lane.b32.xlu0 %v802, 112
        %v804 = vpop.permute.xlu0 %803
        %v806 = vsel %vm486, %v789, %v794
        %v807 = vsel %vm488, %v806, %v799
        %v808 = vsel %vm490, %v799, %v804
        %v810 = vperm.slane %v785, 0
        %v811 = vperm.slane %v785, 1
        %v814 = vmul.f32 %v810, %v807
        %v815 = vmul.f32 %v811, %v808
        %v816 = vadd.f32 %v782, %v814
        %v817 = vadd.f32 %v783, %v815
        %v818 = vld [vmem:[#allocation5] sm:$0xf]
        %v819 = vpack.c.bf16 %v816, %v816
        %v820 = vpack.c.bf16 %v817, %v817
        %v821 = vld [vmem:[#allocation7] sm:$0xff]
        %823 = vset.pattern.permute.xlu0 2
        %824 = vperm.xlu0 %823, %v821
        %v825 = vpop.permute.xlu0 %824
        %v828 = vunpack.c.l.b16 %v818
        %v829 = vpack.c.b16 %v828, %v828
        %830 = vrot.lane.b32.xlu0 %v829, 92
        %v831 = vpop.permute.xlu0 %830
        %v833 = vsel %vm320, %v831, 0
        %v836 = vsel %vm324, %v819, 0
        %v839 = vsel %vm324, %v820, 0
        %841 = vmatpush.bf16.msra.mxu0 0
        %842 = vmatpush.bf16.msra.mxu0 0
        %843 = vmatpush.bf16.msra.mxu0 0
        %844 = vmatpush.bf16.msra.mxu0 0
        %845 = vmatpush.bf16.msra.mxu0 0
        %846 = vmatpush.bf16.msra.mxu0 0
        %847 = vmatpush.bf16.msra.mxu0 0
        %848 = vmatpush.bf16.msra.mxu0 %v836
        %849 = vmatmul.bf16.gmra.mxu0 %v833
        %v850 = vpop.f32.mrf.mxu0
        %v851 = vadd.f32 %v825, %v850
        %v852 = vpop.f32.mrf.mxu0
        %853 = vdwg.mxu0
        %854 = vmatpush.bf16.msra.mxu0 0
        %855 = vmatpush.bf16.msra.mxu0 0
        %856 = vmatpush.bf16.msra.mxu0 0
        %857 = vmatpush.bf16.msra.mxu0 0
        %858 = vmatpush.bf16.msra.mxu0 0
        %859 = vmatpush.bf16.msra.mxu0 0
        %860 = vmatpush.bf16.msra.mxu0 0
        %861 = vmatpush.bf16.msra.mxu0 %v839
        %862 = vmatmul.bf16.gmra.mxu0 %v833
        %v863 = vpop.f32.mrf.mxu0
        %v864 = vadd.f32 %v825, %v863
        %v865 = vpop.f32.mrf.mxu0
        %866 = vdwg.mxu0
        %v867 = vadd.f32 %v851, %v654
        %v868 = vadd.f32 %v864, %v655
        %870 = vrot.lane.b32.xlu0 %v867, 124
        %v871 = vpop.permute.xlu0 %870
        %874 = vrot.lane.b32.xlu0 %v867, 120
        %v875 = vpop.permute.xlu0 %874
        %876 = vrot.lane.b32.xlu0 %v868, 120
        %v877 = vpop.permute.xlu0 %876
        %v878 = vsel %vm488, %v875, %v877
        %881 = vrot.lane.b32.xlu0 %v868, 116
        %v882 = vpop.permute.xlu0 %881
        %vm884 = vcmask 457728
        %v885 = vsel %vm884, %v867, %v871
        %vm886 = vcmask 916480
        %v887 = vsel %vm886, %v885, %v878
        %vm888 = vcmask 326656
        %v889 = vsel %vm888, %v877, %v882
        %v890 = vpack.c.bf16 %v887, %v887
        %v891 = vpack.c.bf16 %v889, %v889
        %892 = vrot.lane.b32.xlu0 %v867, 126
        %v893 = vpop.permute.xlu0 %892
        %895 = vrot.lane.b32.xlu0 %v867, 122
        %v896 = vpop.permute.xlu0 %895
        %898 = vrot.lane.b32.xlu0 %v867, 118
        %v899 = vpop.permute.xlu0 %898
        %900 = vrot.lane.b32.xlu0 %v868, 118
        %v901 = vpop.permute.xlu0 %900
        %vm902 = vcmask 965632
        %v903 = vsel %vm902, %v899, %v901
        %906 = vrot.lane.b32.xlu0 %v868, 114
        %v907 = vpop.permute.xlu0 %906
        %v909 = vsel %vm884, %v893, %v896
        %v910 = vsel %vm886, %v909, %v903
        %v911 = vsel %vm888, %v901, %v907
        %v912 = vpack.c.bf16 %v910, %v910
        %v913 = vpack.c.bf16 %v911, %v911
        %914 = vrot.lane.b32.xlu0 %v829, 80
        %v915 = vpop.permute.xlu0 %914
        %v917 = vsel %vm521, %v915, 0
        %v920 = vsel %vm525, %v912, 0
        %v923 = vsel %vm525, %v913, 0
        %925 = vmatpush.bf16.msra.mxu0 0
        %926 = vmatpush.bf16.msra.mxu0 0
        %927 = vmatpush.bf16.msra.mxu0 0
        %928 = vmatpush.bf16.msra.mxu0 0
        %929 = vmatpush.bf16.msra.mxu0 0
        %930 = vmatpush.bf16.msra.mxu0 0
        %931 = vmatpush.bf16.msra.mxu0 0
        %932 = vmatpush.bf16.msra.mxu0 %v920
        %933 = vmatmul.bf16.gmra.mxu0 %v917
        %v934 = vpop.f32.mrf.mxu0
        %v935 = vadd.f32 0.0, %v934
        %v936 = vpop.f32.mrf.mxu0
        %937 = vdwg.mxu0
        %938 = vmatpush.bf16.msra.mxu0 0
        %939 = vmatpush.bf16.msra.mxu0 0
        %940 = vmatpush.bf16.msra.mxu0 0
        %941 = vmatpush.bf16.msra.mxu0 0
        %942 = vmatpush.bf16.msra.mxu0 0
        %943 = vmatpush.bf16.msra.mxu0 0
        %944 = vmatpush.bf16.msra.mxu0 0
        %945 = vmatpush.bf16.msra.mxu0 %v923
        %946 = vmatmul.bf16.gmra.mxu0 %v917
        %v947 = vpop.f32.mrf.mxu0
        %v948 = vadd.f32 0.0, %v947
        %v949 = vpop.f32.mrf.mxu0
        %950 = vdwg.mxu0
        %951 = vrot.lane.b32.xlu0 %v829, 88
        %v952 = vpop.permute.xlu0 %951
        %v954 = vsel %vm521, %v952, 0
        %v957 = vsel %vm525, %v890, 0
        %v960 = vsel %vm525, %v891, 0
        %962 = vmatpush.bf16.msra.mxu0 0
        %963 = vmatpush.bf16.msra.mxu0 0
        %964 = vmatpush.bf16.msra.mxu0 0
        %965 = vmatpush.bf16.msra.mxu0 0
        %966 = vmatpush.bf16.msra.mxu0 0
        %967 = vmatpush.bf16.msra.mxu0 0
        %968 = vmatpush.bf16.msra.mxu0 0
        %969 = vmatpush.bf16.msra.mxu0 %v957
        %970 = vmatmul.bf16.gmra.mxu0 %v954
        %v971 = vpop.f32.mrf.mxu0
        %v972 = vadd.f32 %v935, %v971
        %v973 = vpop.f32.mrf.mxu0
        %974 = vdwg.mxu0
        %975 = vmatpush.bf16.msra.mxu0 0
        %976 = vmatpush.bf16.msra.mxu0 0
        %977 = vmatpush.bf16.msra.mxu0 0
        %978 = vmatpush.bf16.msra.mxu0 0
        %979 = vmatpush.bf16.msra.mxu0 0
        %980 = vmatpush.bf16.msra.mxu0 0
        %981 = vmatpush.bf16.msra.mxu0 0
        %982 = vmatpush.bf16.msra.mxu0 %v960
        %983 = vmatmul.bf16.gmra.mxu0 %v954
        %v984 = vpop.f32.mrf.mxu0
        %v985 = vadd.f32 %v948, %v984
        %v986 = vpop.f32.mrf.mxu0
        %987 = vdwg.mxu0
        %989 = vrot.lane.b32.xlu0 %v867, 116
        %v990 = vpop.permute.xlu0 %989
        %vm991 = vcmask 949248
        %v992 = vsel %vm991, %v990, %v882
        %994 = vrot.lane.b32.xlu0 %v868, 112
        %v995 = vpop.permute.xlu0 %994
        %v997 = vsel %vm884, %v871, %v875
        %v998 = vsel %vm886, %v997, %v992
        %v999 = vsel %vm888, %v882, %v995
        %v1000 = vpack.c.bf16 %v998, %v998
        %v1001 = vpack.c.bf16 %v999, %v999
        %1002 = vrot.lane.b32.xlu0 %v829, 72
        %v1003 = vpop.permute.xlu0 %1002
        %v1005 = vsel %vm521, %v1003, 0
        %v1008 = vsel %vm525, %v1000, 0
        %v1011 = vsel %vm525, %v1001, 0
        %1013 = vmatpush.bf16.msra.mxu0 0
        %1014 = vmatpush.bf16.msra.mxu0 0
        %1015 = vmatpush.bf16.msra.mxu0 0
        %1016 = vmatpush.bf16.msra.mxu0 0
        %1017 = vmatpush.bf16.msra.mxu0 0
        %1018 = vmatpush.bf16.msra.mxu0 0
        %1019 = vmatpush.bf16.msra.mxu0 0
        %1020 = vmatpush.bf16.msra.mxu0 %v1008
        %1021 = vmatmul.bf16.gmra.mxu0 %v1005
        %v1022 = vpop.f32.mrf.mxu0
        %v1023 = vadd.f32 0.0, %v1022
        %v1024 = vpop.f32.mrf.mxu0
        %1025 = vdwg.mxu0
        %1026 = vmatpush.bf16.msra.mxu0 0
        %1027 = vmatpush.bf16.msra.mxu0 0
        %1028 = vmatpush.bf16.msra.mxu0 0
        %1029 = vmatpush.bf16.msra.mxu0 0
        %1030 = vmatpush.bf16.msra.mxu0 0
        %1031 = vmatpush.bf16.msra.mxu0 0
        %1032 = vmatpush.bf16.msra.mxu0 0
        %1033 = vmatpush.bf16.msra.mxu0 %v1011
        %1034 = vmatmul.bf16.gmra.mxu0 %v1005
        %v1035 = vpop.f32.mrf.mxu0
        %v1036 = vadd.f32 0.0, %v1035
        %v1037 = vpop.f32.mrf.mxu0
        %1038 = vdwg.mxu0
        %v1039 = vadd.f32 %v972, %v1023
        %v1040 = vadd.f32 %v985, %v1036
        %1041 = vset.pattern.permute.xlu0 3
        %1042 = vperm.xlu0 %1041, %v821
        %v1043 = vpop.permute.xlu0 %1042
        %v1045 = vadd.f32 %v1039, %v1043
        %v1046 = vadd.f32 %v1040, %v1043
        %v1047 = vmax.f32 %v1045, 0.0
        %v1048 = vmax.f32 %v1046, 0.0
        %1050 = vrot.lane.b32.xlu0 %v1047, 124
        %v1051 = vpop.permute.xlu0 %1050
        %1054 = vrot.lane.b32.xlu0 %v1047, 120
        %v1055 = vpop.permute.xlu0 %1054
        %1056 = vrot.lane.b32.xlu0 %v1048, 120
        %v1057 = vpop.permute.xlu0 %1056
        %v1058 = vsel %vm488, %v1055, %v1057
        %1061 = vrot.lane.b32.xlu0 %v1048, 116
        %v1062 = vpop.permute.xlu0 %1061
        %v1064 = vsel %vm490, %v1047, %v1051
        %vm1065 = vcmask 850944
        %v1066 = vsel %vm1065, %v1064, %v1058
        %vm1067 = vcmask 228352
        %v1068 = vsel %vm1067, %v1057, %v1062
        %v1069 = vpack.c.bf16 %v1066, %v1066
        %v1070 = vpack.c.bf16 %v1068, %v1068
        %1071 = vrot.lane.b32.xlu0 %v1047, 126
        %v1072 = vpop.permute.xlu0 %1071
        %1074 = vrot.lane.b32.xlu0 %v1047, 122
        %v1075 = vpop.permute.xlu0 %1074
        %1077 = vrot.lane.b32.xlu0 %v1047, 118
        %v1078 = vpop.permute.xlu0 %1077
        %1079 = vrot.lane.b32.xlu0 %v1048, 118
        %v1080 = vpop.permute.xlu0 %1079
        %v1081 = vsel %vm902, %v1078, %v1080
        %1084 = vrot.lane.b32.xlu0 %v1048, 114
        %v1085 = vpop.permute.xlu0 %1084
        %v1087 = vsel %vm490, %v1072, %v1075
        %v1088 = vsel %vm1065, %v1087, %v1081
        %v1089 = vsel %vm1067, %v1080, %v1085
        %v1090 = vpack.c.bf16 %v1088, %v1088
        %v1091 = vpack.c.bf16 %v1089, %v1089
        %1092 = vrot.lane.b32.xlu0 %v829, 56
        %v1093 = vpop.permute.xlu0 %1092
        %v1095 = vsel %vm521, %v1093, 0
        %v1098 = vsel %vm525, %v1090, 0
        %v1101 = vsel %vm525, %v1091, 0
        %1103 = vmatpush.bf16.msra.mxu0 0
        %1104 = vmatpush.bf16.msra.mxu0 0
        %1105 = vmatpush.bf16.msra.mxu0 0
        %1106 = vmatpush.bf16.msra.mxu0 0
        %1107 = vmatpush.bf16.msra.mxu0 0
        %1108 = vmatpush.bf16.msra.mxu0 0
        %1109 = vmatpush.bf16.msra.mxu0 0
        %1110 = vmatpush.bf16.msra.mxu0 %v1098
        %1111 = vmatmul.bf16.gmra.mxu0 %v1095
        %v1112 = vpop.f32.mrf.mxu0
        %v1113 = vadd.f32 0.0, %v1112
        %v1114 = vpop.f32.mrf.mxu0
        %1115 = vdwg.mxu0
        %1116 = vmatpush.bf16.msra.mxu0 0
        %1117 = vmatpush.bf16.msra.mxu0 0
        %1118 = vmatpush.bf16.msra.mxu0 0
        %1119 = vmatpush.bf16.msra.mxu0 0
        %1120 = vmatpush.bf16.msra.mxu0 0
        %1121 = vmatpush.bf16.msra.mxu0 0
        %1122 = vmatpush.bf16.msra.mxu0 0
        %1123 = vmatpush.bf16.msra.mxu0 %v1101
        %1124 = vmatmul.bf16.gmra.mxu0 %v1095
        %v1125 = vpop.f32.mrf.mxu0
        %v1126 = vadd.f32 0.0, %v1125
        %v1127 = vpop.f32.mrf.mxu0
        %1128 = vdwg.mxu0
        %1129 = vrot.lane.b32.xlu0 %v829, 64
        %v1130 = vpop.permute.xlu0 %1129
        %v1132 = vsel %vm521, %v1130, 0
        %v1135 = vsel %vm525, %v1069, 0
        %v1138 = vsel %vm525, %v1070, 0
        %1140 = vmatpush.bf16.msra.mxu0 0
        %1141 = vmatpush.bf16.msra.mxu0 0
        %1142 = vmatpush.bf16.msra.mxu0 0
        %1143 = vmatpush.bf16.msra.mxu0 0
        %1144 = vmatpush.bf16.msra.mxu0 0
        %1145 = vmatpush.bf16.msra.mxu0 0
        %1146 = vmatpush.bf16.msra.mxu0 0
        %1147 = vmatpush.bf16.msra.mxu0 %v1135
        %1148 = vmatmul.bf16.gmra.mxu0 %v1132
        %v1149 = vpop.f32.mrf.mxu0
        %v1150 = vadd.f32 %v1113, %v1149
        %v1151 = vpop.f32.mrf.mxu0
        %1152 = vdwg.mxu0
        %1153 = vmatpush.bf16.msra.mxu0 0
        %1154 = vmatpush.bf16.msra.mxu0 0
        %1155 = vmatpush.bf16.msra.mxu0 0
        %1156 = vmatpush.bf16.msra.mxu0 0
        %1157 = vmatpush.bf16.msra.mxu0 0
        %1158 = vmatpush.bf16.msra.mxu0 0
        %1159 = vmatpush.bf16.msra.mxu0 0
        %1160 = vmatpush.bf16.msra.mxu0 %v1138
        %1161 = vmatmul.bf16.gmra.mxu0 %v1132
        %v1162 = vpop.f32.mrf.mxu0
        %v1163 = vadd.f32 %v1126, %v1162
        %v1164 = vpop.f32.mrf.mxu0
        %1165 = vdwg.mxu0
        %1167 = vrot.lane.b32.xlu0 %v1047, 116
        %v1168 = vpop.permute.xlu0 %1167
        %v1169 = vsel %vm991, %v1168, %v1062
        %1171 = vrot.lane.b32.xlu0 %v1048, 112
        %v1172 = vpop.permute.xlu0 %1171
        %v1174 = vsel %vm490, %v1051, %v1055
        %v1175 = vsel %vm1065, %v1174, %v1169
        %v1176 = vsel %vm1067, %v1062, %v1172
        %v1177 = vpack.c.bf16 %v1175, %v1175
        %v1178 = vpack.c.bf16 %v1176, %v1176
        %1179 = vrot.lane.b32.xlu0 %v829, 48
        %v1180 = vpop.permute.xlu0 %1179
        %v1182 = vsel %vm521, %v1180, 0
        %v1185 = vsel %vm525, %v1177, 0
        %v1188 = vsel %vm525, %v1178, 0
        %1190 = vmatpush.bf16.msra.mxu0 0
        %1191 = vmatpush.bf16.msra.mxu0 0
        %1192 = vmatpush.bf16.msra.mxu0 0
        %1193 = vmatpush.bf16.msra.mxu0 0
        %1194 = vmatpush.bf16.msra.mxu0 0
        %1195 = vmatpush.bf16.msra.mxu0 0
        %1196 = vmatpush.bf16.msra.mxu0 0
        %1197 = vmatpush.bf16.msra.mxu0 %v1185
        %1198 = vmatmul.bf16.gmra.mxu0 %v1182
        %v1199 = vpop.f32.mrf.mxu0
        %v1200 = vadd.f32 0.0, %v1199
        %v1201 = vpop.f32.mrf.mxu0
        %1202 = vdwg.mxu0
        %1203 = vmatpush.bf16.msra.mxu0 0
        %1204 = vmatpush.bf16.msra.mxu0 0
        %1205 = vmatpush.bf16.msra.mxu0 0
        %1206 = vmatpush.bf16.msra.mxu0 0
        %1207 = vmatpush.bf16.msra.mxu0 0
        %1208 = vmatpush.bf16.msra.mxu0 0
        %1209 = vmatpush.bf16.msra.mxu0 0
        %1210 = vmatpush.bf16.msra.mxu0 %v1188
        %1211 = vmatmul.bf16.gmra.mxu0 %v1182
        %v1212 = vpop.f32.mrf.mxu0
        %v1213 = vadd.f32 0.0, %v1212
        %v1214 = vpop.f32.mrf.mxu0
        %1215 = vdwg.mxu0
        %v1216 = vadd.f32 %v1150, %v1200
        %v1217 = vadd.f32 %v1163, %v1213
        %1218 = vset.pattern.permute.xlu0 4
        %1219 = vperm.xlu0 %1218, %v821
        %v1220 = vpop.permute.xlu0 %1219
        %v1222 = vadd.f32 %v1216, %v1220
        %v1223 = vadd.f32 %v1217, %v1220
        %v1224 = vmax.f32 %v1222, 0.0
        %v1225 = vmax.f32 %v1223, 0.0
        %s1226 = scalar_lea.vmem [#allocation8], 8
        %v1227 = vld [vmem:[%s1226] ss:$8 sm:$0x7]
        %1228 = vrot.lane.b32.xlu0 %v867, 112
        %v1229 = vpop.permute.xlu0 %1228
        %v1230 = vsel %vm886, %v1229, %v995
        %1232 = vrot.lane.b32.xlu0 %v868, 104
        %v1233 = vpop.permute.xlu0 %1232
        %v1235 = vsel %vm490, %v867, %v875
        %v1236 = vsel %vm1065, %v1235, %v1230
        %v1237 = vsel %vm1067, %v995, %v1233
        %v1239 = vperm.slane %v1227, 0
        %v1240 = vperm.slane %v1227, 1
        %v1241 = vperm.slane %v1227, 2
        %1247 = vrot.lane.b32.xlu0 %v1236, 112
        %v1248 = vpop.permute.xlu0 %1247
        %1249 = vrot.lane.b32.xlu0 %v1237, 112
        %v1250 = vpop.permute.xlu0 %1249
        %v1251 = vsel %vm886, %v1248, %v1250
        %v1255 = vmul.f32 %v1239, %v1248
        %v1256 = vmul.f32 %v1240, %v1251
        %v1257 = vmul.f32 %v1241, %v1250
        %s1258 = scalar_lea.vmem [#allocation8], 9
        %v1259 = vld [vmem:[%s1258] ss:$8 sm:$0x7]
        %1260 = vrot.lane.b32.xlu0 %v867, 127
        %v1261 = vpop.permute.xlu0 %1260
        %1263 = vrot.lane.b32.xlu0 %v867, 119
        %v1264 = vpop.permute.xlu0 %1263
        %1266 = vrot.lane.b32.xlu0 %v867, 111
        %v1267 = vpop.permute.xlu0 %1266
        %1268 = vrot.lane.b32.xlu0 %v868, 111
        %v1269 = vpop.permute.xlu0 %1268
        %vm1270 = vcmask 908288
        %v1271 = vsel %vm1270, %v1267, %v1269
        %1274 = vrot.lane.b32.xlu0 %v868, 103
        %v1275 = vpop.permute.xlu0 %1274
        %v1277 = vsel %vm490, %v1261, %v1264
        %v1278 = vsel %vm1065, %v1277, %v1271
        %v1279 = vsel %vm1067, %v1269, %v1275
        %v1281 = vperm.slane %v1259, 0
        %v1282 = vperm.slane %v1259, 1
        %v1283 = vperm.slane %v1259, 2
        %1289 = vrot.lane.b32.xlu0 %v1278, 112
        %v1290 = vpop.permute.xlu0 %1289
        %1291 = vrot.lane.b32.xlu0 %v1279, 112
        %v1292 = vpop.permute.xlu0 %1291
        %v1293 = vsel %vm886, %v1290, %v1292
        %v1297 = vmul.f32 %v1281, %v1290
        %v1298 = vmul.f32 %v1282, %v1293
        %v1299 = vmul.f32 %v1283, %v1292
        %v1300 = vadd.f32 %v1255, %v1297
        %v1301 = vadd.f32 %v1256, %v1298
        %v1302 = vadd.f32 %v1257, %v1299
        %s1303 = scalar_lea.vmem [#allocation8], 10
        %v1304 = vld [vmem:[%s1303] ss:$8 sm:$0x7]
        %1306 = vrot.lane.b32.xlu0 %v867, 110
        %v1307 = vpop.permute.xlu0 %1306
        %1308 = vrot.lane.b32.xlu0 %v868, 110
        %v1309 = vpop.permute.xlu0 %1308
        %vm1310 = vcmask 900096
        %v1311 = vsel %vm1310, %v1307, %v1309
        %1314 = vrot.lane.b32.xlu0 %v868, 102
        %v1315 = vpop.permute.xlu0 %1314
        %v1317 = vsel %vm490, %v893, %v899
        %v1318 = vsel %vm1065, %v1317, %v1311
        %v1319 = vsel %vm1067, %v1309, %v1315
        %v1321 = vperm.slane %v1304, 0
        %v1322 = vperm.slane %v1304, 1
        %v1323 = vperm.slane %v1304, 2
        %1329 = vrot.lane.b32.xlu0 %v1318, 112
        %v1330 = vpop.permute.xlu0 %1329
        %1331 = vrot.lane.b32.xlu0 %v1319, 112
        %v1332 = vpop.permute.xlu0 %1331
        %v1333 = vsel %vm886, %v1330, %v1332
        %v1337 = vmul.f32 %v1321, %v1330
        %v1338 = vmul.f32 %v1322, %v1333
        %v1339 = vmul.f32 %v1323, %v1332
        %v1340 = vadd.f32 %v1300, %v1337
        %v1341 = vadd.f32 %v1301, %v1338
        %v1342 = vadd.f32 %v1302, %v1339
        %s1343 = scalar_lea.vmem [#allocation8], 11
        %v1344 = vld [vmem:[%s1343] ss:$8 sm:$0x7]
        %1345 = vrot.lane.b32.xlu0 %v867, 125
        %v1346 = vpop.permute.xlu0 %1345
        %1348 = vrot.lane.b32.xlu0 %v867, 117
        %v1349 = vpop.permute.xlu0 %1348
        %1351 = vrot.lane.b32.xlu0 %v867, 109
        %v1352 = vpop.permute.xlu0 %1351
        %1353 = vrot.lane.b32.xlu0 %v868, 109
        %v1354 = vpop.permute.xlu0 %1353
        %vm1355 = vcmask 891904
        %v1356 = vsel %vm1355, %v1352, %v1354
        %1359 = vrot.lane.b32.xlu0 %v868, 101
        %v1360 = vpop.permute.xlu0 %1359
        %v1362 = vsel %vm490, %v1346, %v1349
        %v1363 = vsel %vm1065, %v1362, %v1356
        %v1364 = vsel %vm1067, %v1354, %v1360
        %v1366 = vperm.slane %v1344, 0
        %v1367 = vperm.slane %v1344, 1
        %v1368 = vperm.slane %v1344, 2
        %1374 = vrot.lane.b32.xlu0 %v1363, 112
        %v1375 = vpop.permute.xlu0 %1374
        %1376 = vrot.lane.b32.xlu0 %v1364, 112
        %v1377 = vpop.permute.xlu0 %1376
        %v1378 = vsel %vm886, %v1375, %v1377
        %v1382 = vmul.f32 %v1366, %v1375
        %v1383 = vmul.f32 %v1367, %v1378
        %v1384 = vmul.f32 %v1368, %v1377
        %v1385 = vadd.f32 %v1340, %v1382
        %v1386 = vadd.f32 %v1341, %v1383
        %v1387 = vadd.f32 %v1342, %v1384
        %s1388 = scalar_lea.vmem [#allocation8], 12
        %v1389 = vld [vmem:[%s1388] ss:$8 sm:$0x7]
        %1391 = vrot.lane.b32.xlu0 %v867, 108
        %v1392 = vpop.permute.xlu0 %1391
        %1393 = vrot.lane.b32.xlu0 %v868, 108
        %v1394 = vpop.permute.xlu0 %1393
        %vm1395 = vcmask 883712
        %v1396 = vsel %vm1395, %v1392, %v1394
        %1399 = vrot.lane.b32.xlu0 %v868, 100
        %v1400 = vpop.permute.xlu0 %1399
        %v1402 = vsel %vm490, %v871, %v990
        %v1403 = vsel %vm1065, %v1402, %v1396
        %v1404 = vsel %vm1067, %v1394, %v1400
        %v1406 = vperm.slane %v1389, 0
        %v1407 = vperm.slane %v1389, 1
        %v1408 = vperm.slane %v1389, 2
        %1414 = vrot.lane.b32.xlu0 %v1403, 112
        %v1415 = vpop.permute.xlu0 %1414
        %1416 = vrot.lane.b32.xlu0 %v1404, 112
        %v1417 = vpop.permute.xlu0 %1416
        %v1418 = vsel %vm886, %v1415, %v1417
        %v1422 = vmul.f32 %v1406, %v1415
        %v1423 = vmul.f32 %v1407, %v1418
        %v1424 = vmul.f32 %v1408, %v1417
        %v1425 = vadd.f32 %v1385, %v1422
        %v1426 = vadd.f32 %v1386, %v1423
        %v1427 = vadd.f32 %v1387, %v1424
        %s1428 = scalar_lea.vmem [#allocation8], 13
        %v1429 = vld [vmem:[%s1428] ss:$8 sm:$0x7]
        %1430 = vrot.lane.b32.xlu0 %v867, 123
        %v1431 = vpop.permute.xlu0 %1430
        %1433 = vrot.lane.b32.xlu0 %v867, 115
        %v1434 = vpop.permute.xlu0 %1433
        %1436 = vrot.lane.b32.xlu0 %v867, 107
        %v1437 = vpop.permute.xlu0 %1436
        %1438 = vrot.lane.b32.xlu0 %v868, 107
        %v1439 = vpop.permute.xlu0 %1438
        %vm1440 = vcmask 875520
        %v1441 = vsel %vm1440, %v1437, %v1439
        %1444 = vrot.lane.b32.xlu0 %v868, 99
        %v1445 = vpop.permute.xlu0 %1444
        %v1447 = vsel %vm490, %v1431, %v1434
        %v1448 = vsel %vm1065, %v1447, %v1441
        %v1449 = vsel %vm1067, %v1439, %v1445
        %v1451 = vperm.slane %v1429, 0
        %v1452 = vperm.slane %v1429, 1
        %v1453 = vperm.slane %v1429, 2
        %1459 = vrot.lane.b32.xlu0 %v1448, 112
        %v1460 = vpop.permute.xlu0 %1459
        %1461 = vrot.lane.b32.xlu0 %v1449, 112
        %v1462 = vpop.permute.xlu0 %1461
        %v1463 = vsel %vm886, %v1460, %v1462
        %v1467 = vmul.f32 %v1451, %v1460
        %v1468 = vmul.f32 %v1452, %v1463
        %v1469 = vmul.f32 %v1453, %v1462
        %v1470 = vadd.f32 %v1425, %v1467
        %v1471 = vadd.f32 %v1426, %v1468
        %v1472 = vadd.f32 %v1427, %v1469
        %s1473 = scalar_lea.vmem [#allocation8], 14
        %v1474 = vld [vmem:[%s1473] ss:$8 sm:$0x7]
        %1475 = vrot.lane.b32.xlu0 %v867, 114
        %v1476 = vpop.permute.xlu0 %1475
        %1478 = vrot.lane.b32.xlu0 %v867, 106
        %v1479 = vpop.permute.xlu0 %1478
        %1480 = vrot.lane.b32.xlu0 %v868, 106
        %v1481 = vpop.permute.xlu0 %1480
        %vm1482 = vcmask 867328
        %v1483 = vsel %vm1482, %v1479, %v1481
        %1486 = vrot.lane.b32.xlu0 %v868, 98
        %v1487 = vpop.permute.xlu0 %1486
        %v1489 = vsel %vm490, %v896, %v1476
        %v1490 = vsel %vm1065, %v1489, %v1483
        %v1491 = vsel %vm1067, %v1481, %v1487
        %v1493 = vperm.slane %v1474, 0
        %v1494 = vperm.slane %v1474, 1
        %v1495 = vperm.slane %v1474, 2
        %1501 = vrot.lane.b32.xlu0 %v1490, 112
        %v1502 = vpop.permute.xlu0 %1501
        %1503 = vrot.lane.b32.xlu0 %v1491, 112
        %v1504 = vpop.permute.xlu0 %1503
        %v1505 = vsel %vm886, %v1502, %v1504
        %v1509 = vmul.f32 %v1493, %v1502
        %v1510 = vmul.f32 %v1494, %v1505
        %v1511 = vmul.f32 %v1495, %v1504
        %v1512 = vadd.f32 %v1470, %v1509
        %v1513 = vadd.f32 %v1471, %v1510
        %v1514 = vadd.f32 %v1472, %v1511
        %s1515 = scalar_lea.vmem [#allocation8], 15
        %v1516 = vld [vmem:[%s1515] ss:$8 sm:$0x7]
        %1517 = vrot.lane.b32.xlu0 %v867, 121
        %v1518 = vpop.permute.xlu0 %1517
        %1520 = vrot.lane.b32.xlu0 %v867, 113
        %v1521 = vpop.permute.xlu0 %1520
        %1523 = vrot.lane.b32.xlu0 %v867, 105
        %v1524 = vpop.permute.xlu0 %1523
        %1525 = vrot.lane.b32.xlu0 %v868, 105
        %v1526 = vpop.permute.xlu0 %1525
        %vm1527 = vcmask 859136
        %v1528 = vsel %vm1527, %v1524, %v1526
        %1531 = vrot.lane.b32.xlu0 %v868, 97
        %v1532 = vpop.permute.xlu0 %1531
        %v1534 = vsel %vm490, %v1518, %v1521
        %v1535 = vsel %vm1065, %v1534, %v1528
        %v1536 = vsel %vm1067, %v1526, %v1532
        %v1538 = vperm.slane %v1516, 0
        %v1539 = vperm.slane %v1516, 1
        %v1540 = vperm.slane %v1516, 2
        %1546 = vrot.lane.b32.xlu0 %v1535, 112
        %v1547 = vpop.permute.xlu0 %1546
        %1548 = vrot.lane.b32.xlu0 %v1536, 112
        %v1549 = vpop.permute.xlu0 %1548
        %v1550 = vsel %vm886, %v1547, %v1549
        %v1554 = vmul.f32 %v1538, %v1547
        %v1555 = vmul.f32 %v1539, %v1550
        %v1556 = vmul.f32 %v1540, %v1549
        %v1557 = vadd.f32 %v1512, %v1554
        %v1558 = vadd.f32 %v1513, %v1555
        %v1559 = vadd.f32 %v1514, %v1556
        %s1560 = scalar_lea.vmem [#allocation8], 40
        %v1561 = vld [vmem:[%s1560] ss:$8 sm:$0x7]
        %1563 = vrot.lane.b32.xlu0 %v868, 96
        %v1564 = vpop.permute.xlu0 %1563
        %v1566 = vsel %vm490, %v875, %v1229
        %v1567 = vsel %vm1065, %v1566, %v1233
        %v1568 = vsel %vm1067, %v1233, %v1564
        %v1570 = vperm.slane %v1561, 0
        %v1571 = vperm.slane %v1561, 1
        %v1572 = vperm.slane %v1561, 2
        %1578 = vrot.lane.b32.xlu0 %v1567, 112
        %v1579 = vpop.permute.xlu0 %1578
        %1580 = vrot.lane.b32.xlu0 %v1568, 112
        %v1581 = vpop.permute.xlu0 %1580
        %v1582 = vsel %vm886, %v1579, %v1581
        %v1586 = vmul.f32 %v1570, %v1579
        %v1587 = vmul.f32 %v1571, %v1582
        %v1588 = vmul.f32 %v1572, %v1581
        %v1589 = vadd.f32 %v1557, %v1586
        %v1590 = vadd.f32 %v1558, %v1587
        %v1591 = vadd.f32 %v1559, %v1588
        %v1592 = vpack.c.bf16 %v1589, %v1589
        %v1593 = vpack.c.bf16 %v1590, %v1590
        %v1594 = vpack.c.bf16 %v1591, %v1591
        %1595 = vset.pattern.permute.xlu0 5
        %1596 = vperm.xlu0 %1595, %v821
        %v1597 = vpop.permute.xlu0 %1596
        %1599 = vrot.lane.b32.xlu0 %v829, 40
        %v1600 = vpop.permute.xlu0 %1599
        %1604 = vrot.lane.b32.xlu0 %v1592, 16
        %v1605 = vpop.permute.xlu0 %1604
        %1606 = vrot.lane.b32.xlu0 %v1593, 16
        %v1607 = vpop.permute.xlu0 %1606
        %1608 = vrot.lane.b32.xlu0 %v1594, 16
        %v1609 = vpop.permute.xlu0 %1608
        %vm1610 = vcmask 130048
        %v1611 = vsel %vm1610, %v1605, %v1607
        %v1612 = vsel %vm1610, %v1607, %v1609
        %v1614 = vsel %vm521, %v1600, 0
        %v1617 = vsel %vm525, %v1611, 0
        %v1620 = vsel %vm525, %v1612, 0
        %1622 = vmatpush.bf16.msra.mxu0 0
        %1623 = vmatpush.bf16.msra.mxu0 0
        %1624 = vmatpush.bf16.msra.mxu0 0
        %1625 = vmatpush.bf16.msra.mxu0 0
        %1626 = vmatpush.bf16.msra.mxu0 0
        %1627 = vmatpush.bf16.msra.mxu0 0
        %1628 = vmatpush.bf16.msra.mxu0 0
        %1629 = vmatpush.bf16.msra.mxu0 %v1617
        %1630 = vmatmul.bf16.gmra.mxu0 %v1614
        %v1631 = vpop.f32.mrf.mxu0
        %v1632 = vadd.f32 %v1597, %v1631
        %v1633 = vpop.f32.mrf.mxu0
        %1634 = vdwg.mxu0
        %1635 = vmatpush.bf16.msra.mxu0 0
        %1636 = vmatpush.bf16.msra.mxu0 0
        %1637 = vmatpush.bf16.msra.mxu0 0
        %1638 = vmatpush.bf16.msra.mxu0 0
        %1639 = vmatpush.bf16.msra.mxu0 0
        %1640 = vmatpush.bf16.msra.mxu0 0
        %1641 = vmatpush.bf16.msra.mxu0 0
        %1642 = vmatpush.bf16.msra.mxu0 %v1620
        %1643 = vmatmul.bf16.gmra.mxu0 %v1614
        %v1644 = vpop.f32.mrf.mxu0
        %v1645 = vadd.f32 %v1597, %v1644
        %v1646 = vpop.f32.mrf.mxu0
        %1647 = vdwg.mxu0
        %v1648 = vadd.f32 %v1632, %v1224
        %v1649 = vadd.f32 %v1645, %v1225
        %1650 = vst [vmem:[%s261] sm:$0xff] %v1648
        %vm1651 = vcmask 654336
        %1652 = vst.msk [vmem:[%s261 + $0x8] sm:$0xff] %vm1651, %v1649
        %s1653 = sand.u32 %s120, 1
        %s1654 = scalar_lea.sflag [#allocation4], %s1653
        %s1655 = sand.u32 %s120, 1
        %s1656 = smul.addr %s1655, 16
        %s1657 = scalar_lea.vmem [#allocation10], %s1656
        // Predicated region
        $region53: #{tpu_custom_call.1} parent=35 // pred_check
          %p1658 = pneg %p130
        $region54: #{tpu_custom_call.1} parent=35 // pred_check_branch
          %1660 = sbr.rel (%p1658) target = $region56
        $region55: #{tpu_custom_call.1} parent=35 // pred_region
          %1662 = vsyncadd %s1654, 0
          %s1663 = smul.addr %s23, 2
          %s1664 = smul.addr %s1663, 8
          %s1665 = scalar_lea.hbm %s4, %s1664
          %s1667 = sshll.u32 %s1657, 4
          %s1668 = int_to_ptr.vmem [resolvable:$true] %s1667
          %s1669 = sshll.u32 %s1665, 4
          %s1670 = int_to_ptr.hbm [resolvable:$true] %s1669
          %1672 = dma.vmem_to_hbm [thread:$0]  %s1668, 256, %s1670, %s1654
        $region56: #{tpu_custom_call.1} parent=35 // pred_fallthru
          _
      $region36: #{tpu_custom_call.1} parent=5 // pred_fallthru
        _
      %p1673 = scmp.le.s32.totalorder 2, %s18
      // Predicated region
      $region57: #{tpu_custom_call.1} parent=5 // pred_check
        %p1674 = pneg %p1673
      $region58: #{tpu_custom_call.1} parent=5 // pred_check_branch
        %1676 = sbr.rel (%p1674) target = $region60
      $region59: #{tpu_custom_call.1} parent=5 // pred_region
        %s1677 = ssub.s32 %s18, 2
        // Predicated region
        $region61: #{tpu_custom_call.1} parent=59 // pred_check
          %p1678 = pneg %p136
        $region62: #{tpu_custom_call.1} parent=59 // pred_check_branch
          %1680 = sbr.rel (%p1678) target = $region64
        $region63: #{tpu_custom_call.1} parent=59 // pred_region
          %s1681 = sand.u32 %s121, 1
          %s1682 = scalar_lea.sflag [#allocation4], %s1681
          %s1683 = sand.u32 %s121, 1
          %s1684 = smul.addr %s1683, 16
          %s1685 = scalar_lea.vmem [#allocation10], %s1684
          %1687 = dma.done %s1682, 256
        $region64: #{tpu_custom_call.1} parent=59 // pred_fallthru
          _
      $region60: #{tpu_custom_call.1} parent=5 // pred_fallthru
        _
    $region6: #{tpu_custom_call.1} parent=1 // loop_footer
      %s22 = sadd.s32 1, %s18
    $region7: #{tpu_custom_call.1} parent=1 // loop_footer_branch
      %17 = sbr.rel target = $region3
    $region8: #{tpu_custom_call.1} parent=1 // loop_exit
      _
    %1688 = vsyncpa [#allocation3], 1
    %s1689 = scalar_lea.sflag [#allocation3], 1
    %1690 = vsyncpa %s1689, 1
    %1691 = vsyncpa [#allocation6], 1
    %1692 = vsyncpa [#allocation9], 1
    %1693 = vsyncpa [#allocation4], 1
    %s1694 = scalar_lea.sflag [#allocation4], 1
    %1695 = vsyncpa %s1694, 1

</llo_original>
